<compile_context>
chip_gen: v6e
topology: v6e:2x2x1
jax: 0.10.0
libtpu: 0.0.40
codegen_flags: <defaults>
</compile_context>

<pallas_src>
import jax
import jax.numpy as jnp
import numpy as np
from jax import lax
from jax.experimental import pallas as pl
from jax.experimental.pallas import tpu as pltpu


def _gn_kernel(recv_ref, send_ref, edge_ref, nodes_ref,
               we_ref, be_ref, wn_ref, bn_ref, wg_ref, bg_ref,
               edge_out_ref, node_out_ref, ctx_out_ref,
               agg_acc, esum_acc):
    """One edge-tile step of the GN block (grid axis 0 walks edge tiles)."""
    t = pl.program_id(0)
    f32 = jnp.float32
    bf16 = jnp.bfloat16

    @pl.when(t == 0)
    def _init():
        agg_acc[...] = jnp.zeros_like(agg_acc)
        esum_acc[...] = jnp.zeros_like(esum_acc)

    nodes = nodes_ref[...]                                  # [N, Dv] bf16 (resident)
    et = edge_ref.shape[0]
    n_nodes = nodes_ref.shape[0]

    # Build the one-hot incidence tile in-kernel from int32 indices (cheap VPU
    # compares) instead of shipping [E, N] f32 one-hot matrices from HBM.
    col = lax.broadcasted_iota(jnp.int32, (et, n_nodes), 1)
    recv_oh = jnp.where(col == recv_ref[...], 1.0, 0.0).astype(bf16)   # [Et, N]
    send_oh = jnp.where(col == send_ref[...], 1.0, 0.0).astype(bf16)   # [Et, N]

    # Gather node rows for this edge tile (exact in bf16).
    v_recv = jnp.dot(recv_oh, nodes, preferred_element_type=f32).astype(bf16)
    v_send = jnp.dot(send_oh, nodes, preferred_element_type=f32).astype(bf16)

    # ---- fused edge phi: single K = De + 2*Dv matmul; ctx folded into be_ref ----
    e_in = jnp.concatenate([edge_ref[...], v_recv, v_send], axis=1)    # [Et, De+2Dv] bf16
    e_lin = jnp.dot(e_in, we_ref[...], preferred_element_type=f32) + be_ref[...]
    e_upd = jnp.maximum(e_lin, 0.0)                                    # [Et, He] f32
    edge_out_ref[...] = e_upd

    # ---- scatter-add into the per-node accumulator ----
    # Contract the edge axis (axis 0) of both operands directly on the MXU; no
    # explicit transpose of the incidence tile is materialized.
    agg_acc[...] += lax.dot_general(
        recv_oh, e_upd.astype(bf16),
        dimension_numbers=(((0,), (0,)), ((), ())),
        preferred_element_type=f32)                                    # [N, He]
    esum_acc[...] += jnp.sum(e_upd, axis=0, keepdims=True)             # [1, He]

    @pl.when(t == pl.num_programs(0) - 1)
    def _finalize():
        # ---- fused node phi (ctx folded into bn_ref) ----
        n_in = jnp.concatenate([agg_acc[...], nodes.astype(f32)], axis=1)   # [N, He+Dv]
        n_lin = jnp.dot(n_in, wn_ref[...], preferred_element_type=f32) + bn_ref[...]
        n_upd = jnp.maximum(n_lin, 0.0)                                # [N, Hn]
        node_out_ref[...] = n_upd

        # ---- fused global phi (ctx folded into bg_ref) ----
        g_in = jnp.concatenate(
            [esum_acc[...], jnp.sum(n_upd, axis=0, keepdims=True)], axis=1)  # [1, He+Hn]
        u_lin = jnp.dot(g_in, wg_ref[...], preferred_element_type=f32) + bg_ref[...]
        ctx_out_ref[...] = jnp.maximum(u_lin, 0.0)                     # [1, Hg]


def graph_network_forward(nodes, edge_attr, edge_index, context, params, *, edge_tile=128):
    """nodes: [N, Dv] f32, edge_attr: [E, De] f32, edge_index: [2, E] int32
    (row0 = send, row1 = recv), context: [1, Du] f32 or None.

    params = ((W_e, b_e), (W_n, b_n), (W_g, b_g)) with PyTorch-Linear-style packed
    weights: W_e [De+2Dv+Du, He], W_n [He+Dv+Du, Hn], W_g [He+Hn+Du, Hg].
    Returns (node_out, edge_out, ctx_out).
    """
    (w_e, b_e), (w_n, b_n), (w_g, b_g) = params
    n_nodes, dv = nodes.shape
    n_edges, de = edge_attr.shape
    he, hn, hg = w_e.shape[1], w_n.shape[1], w_g.shape[1]
    du = w_e.shape[0] - (de + 2 * dv)
    if context is None:
        context = jnp.zeros((1, du), jnp.float32)
    context = context.reshape(1, du).astype(jnp.float32)

    et = min(edge_tile, n_edges)
    # TODO(synk): pad/mask ragged edge counts; demo assumes E % edge_tile == 0.
    assert n_edges % et == 0 and et % 8 == 0 and n_nodes % 8 == 0
    grid = (n_edges // et,)

    send_idx = edge_index[0].astype(jnp.int32).reshape(n_edges, 1)
    recv_idx = edge_index[1].astype(jnp.int32).reshape(n_edges, 1)

    # Fold the (constant, row-broadcast) context contribution of every phi into its
    # bias so each phi becomes a single fused matmul inside the kernel.
    be_eff = context @ w_e[de + 2 * dv:] + b_e[None, :]                # [1, He] f32
    bn_eff = context @ w_n[he + dv:] + b_n[None, :]                    # [1, Hn] f32
    bg_eff = context @ w_g[he + hn:] + b_g[None, :]                    # [1, Hg] f32

    # bf16 operands for the E-scaled matmuls (f32 accumulation on the MXU); the small
    # node/global matmuls stay f32.
    nodes_bf = nodes.astype(jnp.bfloat16)
    edge_bf = edge_attr.astype(jnp.bfloat16)
    we_bf = w_e[:de + 2 * dv].astype(jnp.bfloat16)
    wn_f32 = w_n[:he + dv].astype(jnp.float32)
    wg_f32 = w_g[:he + hn].astype(jnp.float32)

    const = lambda t: (0, 0)
    grid_spec = pltpu.PrefetchScalarGridSpec(
        num_scalar_prefetch=0,
        grid=grid,
        in_specs=[
            pl.BlockSpec((et, 1), lambda t: (t, 0)),        # recv indices (int32)
            pl.BlockSpec((et, 1), lambda t: (t, 0)),        # send indices (int32)
            pl.BlockSpec((et, de), lambda t: (t, 0)),       # edge_attr tile (bf16)
            pl.BlockSpec((n_nodes, dv), const),             # nodes (resident, bf16)
            pl.BlockSpec((de + 2 * dv, he), const),         # packed W_edge (bf16)
            pl.BlockSpec((1, he), const),                   # edge bias (+ ctx term)
            pl.BlockSpec((he + dv, hn), const),             # packed W_node (f32)
            pl.BlockSpec((1, hn), const),                   # node bias (+ ctx term)
            pl.BlockSpec((he + hn, hg), const),             # packed W_global (f32)
            pl.BlockSpec((1, hg), const),                   # global bias (+ ctx term)
        ],
        out_specs=(
            pl.BlockSpec((et, he), lambda t: (t, 0)),       # e' per tile
            pl.BlockSpec((n_nodes, hn), const),             # v' (written on last tile)
            pl.BlockSpec((1, hg), const),                   # u' (written on last tile)
        ),
        scratch_shapes=[
            pltpu.VMEM((n_nodes, he), jnp.float32),         # segment-sum accumulator
            pltpu.VMEM((1, he), jnp.float32),               # sum_k e'_k accumulator
        ],
    )

    edge_out, node_out, ctx_out = pl.pallas_call(
        _gn_kernel,
        out_shape=(
            jax.ShapeDtypeStruct((n_edges, he), jnp.float32),
            jax.ShapeDtypeStruct((n_nodes, hn), jnp.float32),
            jax.ShapeDtypeStruct((1, hg), jnp.float32),
        ),
        grid_spec=grid_spec,
        compiler_params=pltpu.CompilerParams(
            # The edge-tile axis carries the scatter-add accumulator -> "arbitrary".
            # TODO(synk): on v7x, shard edge tiles across the 2 TensorCores with
            # per-core partial accumulators combined in a final pass.
            dimension_semantics=("arbitrary",),
            # Tiny footprint here; real sizes: keep (edge tile + incidence tiles +
            # e' tile) * 2 double-buffers + weights + [N, He] accumulator within the
            # 64 MiB v7x VMEM (128 MiB on v5e/v6e).
            vmem_limit_bytes=32 * 1024 * 1024,
        ),
    )(recv_idx, send_idx, edge_bf, nodes_bf,
      we_bf, be_eff, wn_f32, bn_eff, wg_f32, bg_eff)
    return node_out, edge_out, ctx_out


def make_params(key, dv, de, du, he, hn, hg):
    """PyTorch nn.Linear-style init for the three phi networks (packed weights)."""
    def linear(k, fan_in, fan_out):
        kw, kb = jax.random.split(k)
        bound = 1.0 / np.sqrt(fan_in)
        w = jax.random.uniform(kw, (fan_in, fan_out), jnp.float32, -bound, bound)
        b = jax.random.uniform(kb, (fan_out,), jnp.float32, -bound, bound)
        return w, b
    k_e, k_n, k_g = jax.random.split(key, 3)
    return (linear(k_e, de + 2 * dv + du, he),   # phi_edge:   [e, v_recv, v_send, u]
            linear(k_n, he + dv + du, hn),       # phi_node:   [agg, v, u]
            linear(k_g, he + hn + du, hg))       # phi_global: [sum_e, sum_v, u]


def _reference(nodes, edge_attr, edge_index, context, params):
    """Plain-JAX GN block with the same precision choices as the kernel."""
    (w_e, b_e), (w_n, b_n), (w_g, b_g) = params
    f32, bf16 = jnp.float32, jnp.bfloat16
    n_nodes, dv = nodes.shape
    _, de = edge_attr.shape
    he, hn = w_e.shape[1], w_n.shape[1]
    send, recv = edge_index[0], edge_index[1]
    if context is None:
        context = jnp.zeros((1, w_e.shape[0] - (de + 2 * dv)), f32)

    nodes_bf = nodes.astype(bf16)
    e_in = jnp.concatenate([edge_attr.astype(bf16), nodes_bf[recv], nodes_bf[send]], axis=1)
    e_upd = jax.nn.relu(
        jnp.dot(e_in, w_e[:de + 2 * dv].astype(bf16), preferred_element_type=f32)
        + context @ w_e[de + 2 * dv:] + b_e[None, :])
    agg = jax.ops.segment_sum(e_upd.astype(bf16).astype(f32), recv, num_segments=n_nodes)
    n_upd = jax.nn.relu(
        jnp.concatenate([agg, nodes_bf.astype(f32)], axis=1) @ w_n[:he + dv]
        + context @ w_n[he + dv:] + b_n[None, :])
    u_upd = jax.nn.relu(
        jnp.concatenate([e_upd.sum(0, keepdims=True), n_upd.sum(0, keepdims=True)], axis=1)
        @ w_g[:he + hn] + context @ w_g[he + hn:] + b_g[None, :])
    return n_upd, e_upd, u_upd


if __name__ == "__main__":
    key = jax.random.PRNGKey(0)
    k_nodes, k_edges, k_idx, k_ctx, k_params = jax.random.split(key, 5)

    # Small but lane-friendly sizes: feature dims are multiples of 128 (dense vregs,
    # unmasked stores), node/edge counts multiples of 8; 2 edge tiles exercise the grid.
    N, E = 128, 256
    Dv = De = Du = 128
    He = Hn = Hg = 128

    nodes = jax.random.normal(k_nodes, (N, Dv), jnp.float32)
    edge_attr = jax.random.normal(k_edges, (E, De), jnp.float32)
    edge_index = jax.random.randint(k_idx, (2, E), 0, N, jnp.int32)  # row0=send, row1=recv
    context = jax.random.normal(k_ctx, (1, Du), jnp.float32)
    params = make_params(k_params, Dv, De, Du, He, Hn, Hg)

    node_out, edge_out, ctx_out = graph_network_forward(
        nodes, edge_attr, edge_index, context, params)
    jax.block_until_ready((node_out, edge_out, ctx_out))

    # Sanity check against a plain-JAX reference of the same GN block.
    n_ref, e_ref, u_ref = _reference(nodes, edge_attr, edge_index, context, params)
    np.testing.assert_allclose(np.asarray(edge_out), np.asarray(e_ref), rtol=2e-3, atol=2e-3)
    np.testing.assert_allclose(np.asarray(node_out), np.asarray(n_ref), rtol=2e-3, atol=2e-3)
    np.testing.assert_allclose(np.asarray(ctx_out), np.asarray(u_ref), rtol=2e-3, atol=2e-3)

    print("KERNEL_OK")
</pallas_src>

<mosaic_0001>
module attributes {stable_mosaic.version = 11 : i64} {
  func.func @_gn_kernel(%arg0: i32, %arg1: memref<128x1xi32, #tpu.memory_space<vmem>>, %arg2: memref<128x1xi32, #tpu.memory_space<vmem>>, %arg3: memref<128x128xbf16, #tpu.memory_space<vmem>>, %arg4: memref<128x128xbf16, #tpu.memory_space<vmem>>, %arg5: memref<384x128xbf16, #tpu.memory_space<vmem>>, %arg6: memref<1x128xf32, #tpu.memory_space<vmem>>, %arg7: memref<256x128xf32, #tpu.memory_space<vmem>>, %arg8: memref<1x128xf32, #tpu.memory_space<vmem>>, %arg9: memref<256x128xf32, #tpu.memory_space<vmem>>, %arg10: memref<1x128xf32, #tpu.memory_space<vmem>>, %arg11: memref<128x128xf32, #tpu.memory_space<vmem>>, %arg12: memref<128x128xf32, #tpu.memory_space<vmem>>, %arg13: memref<1x128xf32, #tpu.memory_space<vmem>>, %arg14: memref<128x128xf32, #tpu.memory_space<vmem>>, %arg15: memref<1x128xf32, #tpu.memory_space<vmem>>) attributes {dimension_semantics = [#tpu.dimension_semantics<arbitrary>], iteration_bounds = array<i64: 2>, scalar_prefetch = 0 : i64, scratch_operands = 2 : i64, tpu.core_type = #tpu.core_type<tc>, window_params = [{transform_indices = @transform_0, window_bounds = array<i64: 128, 1>}, {transform_indices = @transform_1, window_bounds = array<i64: 128, 1>}, {transform_indices = @transform_2, window_bounds = array<i64: 128, 128>}, {pipeline_mode = #tpu.pipeline_mode<synchronous>, transform_indices = @transform_3, window_bounds = array<i64: 128, 128>}, {pipeline_mode = #tpu.pipeline_mode<synchronous>, transform_indices = @transform_4, window_bounds = array<i64: 384, 128>}, {pipeline_mode = #tpu.pipeline_mode<synchronous>, transform_indices = @transform_5, window_bounds = array<i64: 1, 128>}, {pipeline_mode = #tpu.pipeline_mode<synchronous>, transform_indices = @transform_6, window_bounds = array<i64: 256, 128>}, {pipeline_mode = #tpu.pipeline_mode<synchronous>, transform_indices = @transform_7, window_bounds = array<i64: 1, 128>}, {pipeline_mode = #tpu.pipeline_mode<synchronous>, transform_indices = @transform_8, window_bounds = array<i64: 256, 128>}, {pipeline_mode = #tpu.pipeline_mode<synchronous>, transform_indices = @transform_9, window_bounds = array<i64: 1, 128>}, {transform_indices = @transform_10, window_bounds = array<i64: 128, 128>}, {pipeline_mode = #tpu.pipeline_mode<synchronous>, transform_indices = @transform_11, window_bounds = array<i64: 128, 128>}, {pipeline_mode = #tpu.pipeline_mode<synchronous>, transform_indices = @transform_12, window_bounds = array<i64: 1, 128>}]} {
    %c0_i32 = arith.constant 0 : i32
    %0 = arith.cmpi eq, %arg0, %c0_i32 : i32
    %1 = arith.extui %0 : i1 to i32
    %c0_i32_0 = arith.constant 0 : i32
    %2 = arith.cmpi ne, %1, %c0_i32_0 : i32
    scf.if %2 {
      %cst_32 = arith.constant 0.000000e+00 : f32
      %46 = vector.broadcast %cst_32 : f32 to vector<128x128xf32>
      %c0_33 = arith.constant 0 : index
      %c0_34 = arith.constant 0 : index
      %47 = vector.load %arg14[%c0_33, %c0_34] : memref<128x128xf32, #tpu.memory_space<vmem>>, vector<128x128xf32>
      tpu.vector_store %arg14[%c0_33, %c0_34], %46 {strides = array<i32>} : memref<128x128xf32, #tpu.memory_space<vmem>>, vector<128x128xf32>,
      %cst_35 = arith.constant 0.000000e+00 : f32
      %48 = vector.broadcast %cst_35 : f32 to vector<1x128xf32>
      %c0_36 = arith.constant 0 : index
      %c0_37 = arith.constant 0 : index
      %49 = vector.load %arg15[%c0_36, %c0_37] : memref<1x128xf32, #tpu.memory_space<vmem>>, vector<1x128xf32>
      tpu.vector_store %arg15[%c0_36, %c0_37], %48 {strides = array<i32>} : memref<1x128xf32, #tpu.memory_space<vmem>>, vector<1x128xf32>,
    } else {
    }
    %c0 = arith.constant 0 : index
    %c0_1 = arith.constant 0 : index
    %3 = vector.load %arg4[%c0, %c0_1] : memref<128x128xbf16, #tpu.memory_space<vmem>>, vector<128x128xbf16>
    %4 = tpu.iota {dimensions = array<i32: 1>} : vector<128x128xi32>
    %c0_2 = arith.constant 0 : index
    %c0_3 = arith.constant 0 : index
    %5 = vector.load %arg1[%c0_2, %c0_3] : memref<128x1xi32, #tpu.memory_space<vmem>>, vector<128x1xi32>
    %6 = vector.broadcast %5 : vector<128x1xi32> to vector<128x128xi32>
    %7 = arith.cmpi eq, %4, %6 : vector<128x128xi32>
    %cst = arith.constant 1.000000e+00 : f32
    %cst_4 = arith.constant 0.000000e+00 : f32
    %8 = vector.broadcast %cst : f32 to vector<128x128xf32>
    %9 = vector.broadcast %cst_4 : f32 to vector<128x128xf32>
    %10 = arith.select %7, %8, %9 : vector<128x128xi1>, vector<128x128xf32>
    %11 = arith.truncf %10 : vector<128x128xf32> to vector<128x128xbf16>
    %c0_5 = arith.constant 0 : index
    %c0_6 = arith.constant 0 : index
    %12 = vector.load %arg2[%c0_5, %c0_6] : memref<128x1xi32, #tpu.memory_space<vmem>>, vector<128x1xi32>
    %13 = vector.broadcast %12 : vector<128x1xi32> to vector<128x128xi32>
    %14 = arith.cmpi eq, %4, %13 : vector<128x128xi32>
    %cst_7 = arith.constant 1.000000e+00 : f32
    %cst_8 = arith.constant 0.000000e+00 : f32
    %15 = vector.broadcast %cst_7 : f32 to vector<128x128xf32>
    %16 = vector.broadcast %cst_8 : f32 to vector<128x128xf32>
    %17 = arith.select %14, %15, %16 : vector<128x128xi1>, vector<128x128xf32>
    %18 = arith.truncf %17 : vector<128x128xf32> to vector<128x128xbf16>
    %cst_9 = arith.constant dense<0.000000e+00> : vector<128x128xf32>
    %19 = tpu.matmul %11, %3, %cst_9 {dimension_numbers = #tpu.dot_dimension_numbers<[1], [0], [0], [1], [0, 0, 1, 1], [], []>} : vector<128x128xbf16>, vector<128x128xbf16>, vector<128x128xf32> -> vector<128x128xf32>
    %20 = arith.truncf %19 : vector<128x128xf32> to vector<128x128xbf16>
    %cst_10 = arith.constant dense<0.000000e+00> : vector<128x128xf32>
    %21 = tpu.matmul %18, %3, %cst_10 {dimension_numbers = #tpu.dot_dimension_numbers<[1], [0], [0], [1], [0, 0, 1, 1], [], []>} : vector<128x128xbf16>, vector<128x128xbf16>, vector<128x128xf32> -> vector<128x128xf32>
    %22 = arith.truncf %21 : vector<128x128xf32> to vector<128x128xbf16>
    %c0_11 = arith.constant 0 : index
    %c0_12 = arith.constant 0 : index
    %23 = vector.load %arg3[%c0_11, %c0_12] : memref<128x128xbf16, #tpu.memory_space<vmem>>, vector<128x128xbf16>
    %24 = tpu.concatenate %23, %20, %22 in 1 : vector<128x128xbf16>, vector<128x128xbf16>, vector<128x128xbf16> -> vector<128x384xbf16>
    %c0_13 = arith.constant 0 : index
    %c0_14 = arith.constant 0 : index
    %25 = vector.load %arg5[%c0_13, %c0_14] : memref<384x128xbf16, #tpu.memory_space<vmem>>, vector<384x128xbf16>
    %cst_15 = arith.constant dense<0.000000e+00> : vector<128x128xf32>
    %26 = tpu.matmul %24, %25, %cst_15 {dimension_numbers = #tpu.dot_dimension_numbers<[1], [0], [0], [1], [0, 0, 1, 1], [], []>} : vector<128x384xbf16>, vector<384x128xbf16>, vector<128x128xf32> -> vector<128x128xf32>
    %c0_16 = arith.constant 0 : index
    %c0_17 = arith.constant 0 : index
    %27 = vector.load %arg6[%c0_16, %c0_17] : memref<1x128xf32, #tpu.memory_space<vmem>>, vector<1x128xf32>
    %28 = vector.broadcast %27 : vector<1x128xf32> to vector<128x128xf32>
    %29 = arith.addf %26, %28 : vector<128x128xf32>
    %cst_18 = arith.constant 0.000000e+00 : f32
    %30 = vector.broadcast %cst_18 : f32 to vector<128x128xf32>
    %31 = arith.maximumf %29, %30 : vector<128x128xf32>
    %c0_19 = arith.constant 0 : index
    %c0_20 = arith.constant 0 : index
    %32 = vector.load %arg11[%c0_19, %c0_20] : memref<128x128xf32, #tpu.memory_space<vmem>>, vector<128x128xf32>
    tpu.vector_store %arg11[%c0_19, %c0_20], %31 {strides = array<i32>} : memref<128x128xf32, #tpu.memory_space<vmem>>, vector<128x128xf32>,
    %c0_21 = arith.constant 0 : index
    %c0_22 = arith.constant 0 : index
    %33 = vector.load %arg14[%c0_21, %c0_22] : memref<128x128xf32, #tpu.memory_space<vmem>>, vector<128x128xf32>
    %34 = arith.truncf %31 : vector<128x128xf32> to vector<128x128xbf16>
    %cst_23 = arith.constant dense<0.000000e+00> : vector<128x128xf32>
    %35 = tpu.matmul %11, %34, %cst_23 {dimension_numbers = #tpu.dot_dimension_numbers<[0], [0], [1], [1], [0, 1, 1, 1], [], []>} : vector<128x128xbf16>, vector<128x128xbf16>, vector<128x128xf32> -> vector<128x128xf32>
    %36 = arith.addf %33, %35 : vector<128x128xf32>
    %c0_24 = arith.constant 0 : index
    %c0_25 = arith.constant 0 : index
    %37 = vector.load %arg14[%c0_24, %c0_25] : memref<128x128xf32, #tpu.memory_space<vmem>>, vector<128x128xf32>
    tpu.vector_store %arg14[%c0_24, %c0_25], %36 {strides = array<i32>} : memref<128x128xf32, #tpu.memory_space<vmem>>, vector<128x128xf32>,
    %c0_26 = arith.constant 0 : index
    %c0_27 = arith.constant 0 : index
    %38 = vector.load %arg15[%c0_26, %c0_27] : memref<1x128xf32, #tpu.memory_space<vmem>>, vector<1x128xf32>
    %cst_28 = arith.constant dense<0.000000e+00> : vector<128xf32>
    %39 = vector.multi_reduction <add>, %31, %cst_28 [0] : vector<128x128xf32> to vector<128xf32>
    %40 = vector.shape_cast %39 : vector<128xf32> to vector<1x128xf32>
    %41 = arith.addf %38, %40 : vector<1x128xf32>
    %c0_29 = arith.constant 0 : index
    %c0_30 = arith.constant 0 : index
    %42 = vector.load %arg15[%c0_29, %c0_30] : memref<1x128xf32, #tpu.memory_space<vmem>>, vector<1x128xf32>
    tpu.vector_store %arg15[%c0_29, %c0_30], %41 {strides = array<i32>} : memref<1x128xf32, #tpu.memory_space<vmem>>, vector<1x128xf32>,
    %c1_i32 = arith.constant 1 : i32
    %43 = arith.cmpi eq, %arg0, %c1_i32 : i32
    %44 = arith.extui %43 : i1 to i32
    %c0_i32_31 = arith.constant 0 : i32
    %45 = arith.cmpi ne, %44, %c0_i32_31 : i32
    scf.if %45 {
      %c0_32 = arith.constant 0 : index
      %c0_33 = arith.constant 0 : index
      %46 = vector.load %arg14[%c0_32, %c0_33] : memref<128x128xf32, #tpu.memory_space<vmem>>, vector<128x128xf32>
      %47 = arith.extf %3 : vector<128x128xbf16> to vector<128x128xf32>
      %48 = tpu.concatenate %46, %47 in 1 : vector<128x128xf32>, vector<128x128xf32> -> vector<128x256xf32>
      %c0_34 = arith.constant 0 : index
      %c0_35 = arith.constant 0 : index
      %49 = vector.load %arg7[%c0_34, %c0_35] : memref<256x128xf32, #tpu.memory_space<vmem>>, vector<256x128xf32>
      %cst_36 = arith.constant dense<0.000000e+00> : vector<128x128xf32>
      %50 = tpu.matmul %48, %49, %cst_36 {dimension_numbers = #tpu.dot_dimension_numbers<[1], [0], [0], [1], [0, 0, 1, 1], [], []>} : vector<128x256xf32>, vector<256x128xf32>, vector<128x128xf32> -> vector<128x128xf32>
      %c0_37 = arith.constant 0 : index
      %c0_38 = arith.constant 0 : index
      %51 = vector.load %arg8[%c0_37, %c0_38] : memref<1x128xf32, #tpu.memory_space<vmem>>, vector<1x128xf32>
      %52 = vector.broadcast %51 : vector<1x128xf32> to vector<128x128xf32>
      %53 = arith.addf %50, %52 : vector<128x128xf32>
      %cst_39 = arith.constant 0.000000e+00 : f32
      %54 = vector.broadcast %cst_39 : f32 to vector<128x128xf32>
      %55 = arith.maximumf %53, %54 : vector<128x128xf32>
      %c0_40 = arith.constant 0 : index
      %c0_41 = arith.constant 0 : index
      %56 = vector.load %arg12[%c0_40, %c0_41] : memref<128x128xf32, #tpu.memory_space<vmem>>, vector<128x128xf32>
      tpu.vector_store %arg12[%c0_40, %c0_41], %55 {strides = array<i32>} : memref<128x128xf32, #tpu.memory_space<vmem>>, vector<128x128xf32>,
      %c0_42 = arith.constant 0 : index
      %c0_43 = arith.constant 0 : index
      %57 = vector.load %arg15[%c0_42, %c0_43] : memref<1x128xf32, #tpu.memory_space<vmem>>, vector<1x128xf32>
      %cst_44 = arith.constant dense<0.000000e+00> : vector<128xf32>
      %58 = vector.multi_reduction <add>, %55, %cst_44 [0] : vector<128x128xf32> to vector<128xf32>
      %59 = vector.shape_cast %58 : vector<128xf32> to vector<1x128xf32>
      %60 = tpu.concatenate %57, %59 in 1 : vector<1x128xf32>, vector<1x128xf32> -> vector<1x256xf32>
      %c0_45 = arith.constant 0 : index
      %c0_46 = arith.constant 0 : index
      %61 = vector.load %arg9[%c0_45, %c0_46] : memref<256x128xf32, #tpu.memory_space<vmem>>, vector<256x128xf32>
      %cst_47 = arith.constant dense<0.000000e+00> : vector<1x128xf32>
      %62 = tpu.matmul %60, %61, %cst_47 {dimension_numbers = #tpu.dot_dimension_numbers<[1], [0], [0], [1], [0, 0, 1, 1], [], []>} : vector<1x256xf32>, vector<256x128xf32>, vector<1x128xf32> -> vector<1x128xf32>
      %c0_48 = arith.constant 0 : index
      %c0_49 = arith.constant 0 : index
      %63 = vector.load %arg10[%c0_48, %c0_49] : memref<1x128xf32, #tpu.memory_space<vmem>>, vector<1x128xf32>
      %64 = arith.addf %62, %63 : vector<1x128xf32>
      %cst_50 = arith.constant 0.000000e+00 : f32
      %65 = vector.broadcast %cst_50 : f32 to vector<1x128xf32>
      %66 = arith.maximumf %64, %65 : vector<1x128xf32>
      %c0_51 = arith.constant 0 : index
      %c0_52 = arith.constant 0 : index
      %67 = vector.load %arg13[%c0_51, %c0_52] : memref<1x128xf32, #tpu.memory_space<vmem>>, vector<1x128xf32>
      tpu.vector_store %arg13[%c0_51, %c0_52], %66 {strides = array<i32>} : memref<1x128xf32, #tpu.memory_space<vmem>>, vector<1x128xf32>,
    } else {
    }
    return
  }
  func.func @transform_0(%arg0: i32) -> (i32, i32) {
    %c0_i32 = arith.constant 0 : i32
    %c0_i32_0 = arith.constant 0 : i32
    return %arg0, %c0_i32 : i32, i32
  }
  func.func @transform_1(%arg0: i32) -> (i32, i32) {
    %c0_i32 = arith.constant 0 : i32
    %c0_i32_0 = arith.constant 0 : i32
    return %arg0, %c0_i32 : i32, i32
  }
  func.func @transform_2(%arg0: i32) -> (i32, i32) {
    %c0_i32 = arith.constant 0 : i32
    %c0_i32_0 = arith.constant 0 : i32
    return %arg0, %c0_i32 : i32, i32
  }
  func.func @transform_3(%arg0: i32) -> (i32, i32) {
    %c0_i32 = arith.constant 0 : i32
    %c0_i32_0 = arith.constant 0 : i32
    %c0_i32_1 = arith.constant 0 : i32
    return %c0_i32, %c0_i32_0 : i32, i32
  }
  func.func @transform_4(%arg0: i32) -> (i32, i32) {
    %c0_i32 = arith.constant 0 : i32
    %c0_i32_0 = arith.constant 0 : i32
    %c0_i32_1 = arith.constant 0 : i32
    return %c0_i32, %c0_i32_0 : i32, i32
  }
  func.func @transform_5(%arg0: i32) -> (i32, i32) {
    %c0_i32 = arith.constant 0 : i32
    %c0_i32_0 = arith.constant 0 : i32
    %c0_i32_1 = arith.constant 0 : i32
    return %c0_i32, %c0_i32_0 : i32, i32
  }
  func.func @transform_6(%arg0: i32) -> (i32, i32) {
    %c0_i32 = arith.constant 0 : i32
    %c0_i32_0 = arith.constant 0 : i32
    %c0_i32_1 = arith.constant 0 : i32
    return %c0_i32, %c0_i32_0 : i32, i32
  }
  func.func @transform_7(%arg0: i32) -> (i32, i32) {
    %c0_i32 = arith.constant 0 : i32
    %c0_i32_0 = arith.constant 0 : i32
    %c0_i32_1 = arith.constant 0 : i32
    return %c0_i32, %c0_i32_0 : i32, i32
  }
  func.func @transform_8(%arg0: i32) -> (i32, i32) {
    %c0_i32 = arith.constant 0 : i32
    %c0_i32_0 = arith.constant 0 : i32
    %c0_i32_1 = arith.constant 0 : i32
    return %c0_i32, %c0_i32_0 : i32, i32
  }
  func.func @transform_9(%arg0: i32) -> (i32, i32) {
    %c0_i32 = arith.constant 0 : i32
    %c0_i32_0 = arith.constant 0 : i32
    %c0_i32_1 = arith.constant 0 : i32
    return %c0_i32, %c0_i32_0 : i32, i32
  }
  func.func @transform_10(%arg0: i32) -> (i32, i32) {
    %c0_i32 = arith.constant 0 : i32
    %c0_i32_0 = arith.constant 0 : i32
    return %arg0, %c0_i32 : i32, i32
  }
  func.func @transform_11(%arg0: i32) -> (i32, i32) {
    %c0_i32 = arith.constant 0 : i32
    %c0_i32_0 = arith.constant 0 : i32
    %c0_i32_1 = arith.constant 0 : i32
    return %c0_i32, %c0_i32_0 : i32, i32
  }
  func.func @transform_12(%arg0: i32) -> (i32, i32) {
    %c0_i32 = arith.constant 0 : i32
    %c0_i32_0 = arith.constant 0 : i32
    %c0_i32_1 = arith.constant 0 : i32
    return %c0_i32, %c0_i32_0 : i32, i32
  }
}

</mosaic_0001>

<llo_original>
// kernel: tpu_custom_call.1
$region0: #{tpu_custom_call.1}
  #allocation0 [shape = 'u32[]', space=smem, size = 0x4, offset = 0x4, fixed_abs, tag = 'smem constant byte address 0x4 - core index']
  #allocation1 [shape = 'u32[144,128]{1,0:T(1,128)}', space=vmem, size = 0x12000, scoped, tag = 'internal scratch']
  #allocation2 [shape = 'f32[128,128]{1,0:T(8,128)}', space=vmem, size = 0x10000, scoped, tag = 'scratch operand']
  #allocation3 [shape = 'f32[1,128]{1,0:T(1,128)}', space=vmem, size = 0x200, scoped, tag = 'scratch operand']
  %s0 = inlined_call_operand.vmem [shape: s32[256,1], index: 0, kind: input, shape index: {}]
  %s1 = inlined_call_operand.vmem [shape: s32[256,1], index: 1, kind: input, shape index: {}]
  %s2 = inlined_call_operand.hbm [shape: bf16[256,128], index: 2, kind: input, shape index: {}]
  %s3 = inlined_call_operand.hbm [shape: bf16[128,128], index: 3, kind: input, shape index: {}]
  %s4 = inlined_call_operand.hbm [shape: bf16[384,128], index: 4, kind: input, shape index: {}]
  %s5 = inlined_call_operand.vmem [shape: f32[1,128], index: 5, kind: input, shape index: {}]
  %s6 = inlined_call_operand.vmem [shape: f32[256,128], index: 6, kind: input, shape index: {}]
  %s7 = inlined_call_operand.vmem [shape: f32[1,128], index: 7, kind: input, shape index: {}]
  %s8 = inlined_call_operand.vmem [shape: f32[256,128], index: 8, kind: input, shape index: {}]
  %s9 = inlined_call_operand.vmem [shape: f32[1,128], index: 9, kind: input, shape index: {}]
  %s10 = inlined_call_operand.hbm [shape: f32[256,128], index: 10, kind: output, shape index: {0}]
  %s11 = inlined_call_operand.hbm [shape: f32[128,128], index: 11, kind: output, shape index: {1}]
  %s12 = inlined_call_operand.hbm [shape: f32[1,128], index: 12, kind: output, shape index: {2}]
  %13 = xla_tuple %s10, %s11, %s12
  %s14 = sld [smem:[#allocation0]]
  $region109: #{tpu_custom_call.1} parent=0
    _
  %s16 = ssub.s32 1, %s14
  %s17 = scalar_select 0, %s16, %s14
  $region1: #{tpu_custom_call.1} parent=0
    #allocation4 [shape = 'u8[65536]{0}', space=vmem, size = 0x10000, scoped, tag = 'input window, operand 2']
    #allocation5 [shape = 's32[2]{0}', space=sflag, size = 0x8, scoped, tag = 'scoped memory for tpu_custom_call.1']
    #allocation6 [shape = 's32[2]{0}', space=sflag, size = 0x8, scoped, tag = 'scoped memory for tpu_custom_call.1']
    #allocation7 [shape = 'u8[32768]{0}', space=vmem, size = 0x8000, scoped, tag = 'input window, operand 3, single buffered']
    #allocation8 [shape = 's32[1]{0}', space=sflag, size = 0x4, scoped, tag = 'scoped memory for tpu_custom_call.1']
    #allocation9 [shape = 'u8[98304]{0}', space=vmem, size = 0x18000, scoped, tag = 'input window, operand 4, single buffered']
    #allocation10 [shape = 'u8[131072]{0}', space=vmem, size = 0x20000, scoped, tag = 'output window, operand 0']
    #allocation11 [shape = 'u8[65536]{0}', space=vmem, size = 0x10000, scoped, tag = 'output window, operand 1, single buffered']
    #allocation12 [shape = 's32[1]{0}', space=sflag, size = 0x4, scoped, tag = 'scoped memory for tpu_custom_call.1']
    #allocation13 [shape = 'u8[512]{0}', space=vmem, size = 0x400, scoped, tag = 'output window, operand 2, single buffered']
    %18 = vsyncpa [#allocation5], 0
    %s19 = scalar_lea.sflag [#allocation5], 1
    %20 = vsyncpa %s19, 0
    %21 = vsyncpa [#allocation8], 0
    %22 = vsyncpa [#allocation6], 0
    %s23 = scalar_lea.sflag [#allocation6], 1
    %24 = vsyncpa %s23, 0
    %25 = vsyncpa [#allocation12], 0
    loop: start=0, step=1, limit=4
    $region2: #{tpu_custom_call.1} parent=1 // loop_pre_header
      _
    $region3: #{tpu_custom_call.1} parent=1 // loop_header
      %s27 = sphi 0, %s31
      %p28 = scmp.ge.s32.totalorder %s27, 4
      %s37 = sphi 0, %s39
      %s40 = sphi 0, %s37
      %s41 = sphi 0, %s40
      %s57 = sphi 0, %s41
      %s63 = sphi 0, %s65
      %s66 = sphi 0, %s63
      %s67 = sphi 0, %s66
      %s83 = sphi 0, %s67
      %s89 = sphi 0, %s91
      %s92 = sphi 0, %s89
      %s93 = sphi 0, %s92
      %s109 = sphi 0, %s93
      %s113 = sphi 0, %s113
      %s115 = sphi 0, %s113
      %s116 = sphi 0, %s115
      %s130 = sphi 0, %s116
      %s134 = sphi 0, %s134
      %s136 = sphi 0, %s134
      %s137 = sphi 0, %s136
      %s151 = sphi 0, %s137
      %s155 = sphi 0, %s155
      %s157 = sphi 0, %s155
      %s158 = sphi 0, %s157
      %s172 = sphi 0, %s158
      %s176 = sphi 0, %s176
      %s178 = sphi 0, %s176
      %s179 = sphi 0, %s178
      %s193 = sphi 0, %s179
      %s197 = sphi 0, %s197
      %s199 = sphi 0, %s197
      %s200 = sphi 0, %s199
      %s214 = sphi 0, %s200
      %s218 = sphi 0, %s218
      %s220 = sphi 0, %s218
      %s221 = sphi 0, %s220
      %s235 = sphi 0, %s221
      %s239 = sphi 0, %s239
      %s241 = sphi 0, %s239
      %s242 = sphi 0, %s241
      %s256 = sphi 0, %s242
      %s262 = sphi 0, %s264
      %s265 = sphi 0, %s262
      %s266 = sphi 0, %s265
      %s282 = sphi 0, %s266
      %s286 = sphi 0, %s286
      %s288 = sphi 0, %s286
      %s289 = sphi 0, %s288
      %s303 = sphi 0, %s289
      %s307 = sphi 0, %s307
      %s309 = sphi 0, %s307
      %s310 = sphi 0, %s309
      %s324 = sphi 0, %s310
    $region4: #{tpu_custom_call.1} parent=1 // loop_header_branch
      %30 = sbr.rel (%p28) target = $region8
    $region5: #{tpu_custom_call.1} parent=1 // loop_body
      %s32 = ssub.s32 %s27, 1
      %s33 = ssub.s32 %s27, 2
      %s34 = sadd.s32 %s27, 1
      %s35 = ssub.s32 %s27, %s34
      %p36 = scmp.eq.s32.totalorder %s35, 0
      %s38 = sadd.s32 %s37, 1
      %s39 = scalar_select %p36, %s37, %s38
      %p42 = pneg %p36
      %p43 = scmp.eq.s32.totalorder %s27, 1
      %p44 = por %p42, %p43
      %p45 = scmp.ne.s32.totalorder %s37, %s40
      %p46 = scmp.eq.s32.totalorder %s27, 0
      %p47 = por %p45, %p46
      %p48 = scmp.ne.s32.totalorder %s37, %s40
      %p49 = scmp.eq.s32.totalorder %s32, 1
      %p50 = por %p48, %p49
      %p51 = scmp.ne.s32.totalorder %s40, %s41
      %p52 = scmp.eq.s32.totalorder %s32, 0
      %p53 = por %p51, %p52
      %p54 = scmp.ne.s32.totalorder %s40, %s41
      %p55 = scmp.eq.s32.totalorder %s33, 1
      %p56 = por %p54, %p55
      %p58 = scmp.ne.s32.totalorder %s41, %s57
      %p59 = scmp.eq.s32.totalorder %s33, 0
      %p60 = por %p58, %p59
      %s61 = ssub.s32 %s27, %s34
      %p62 = scmp.eq.s32.totalorder %s61, 0
      %s64 = sadd.s32 %s63, 1
      %s65 = scalar_select %p62, %s63, %s64
      %p68 = pneg %p62
      %p69 = scmp.eq.s32.totalorder %s27, 1
      %p70 = por %p68, %p69
      %p71 = scmp.ne.s32.totalorder %s63, %s66
      %p72 = scmp.eq.s32.totalorder %s27, 0
      %p73 = por %p71, %p72
      %p74 = scmp.ne.s32.totalorder %s63, %s66
      %p75 = scmp.eq.s32.totalorder %s32, 1
      %p76 = por %p74, %p75
      %p77 = scmp.ne.s32.totalorder %s66, %s67
      %p78 = scmp.eq.s32.totalorder %s32, 0
      %p79 = por %p77, %p78
      %p80 = scmp.ne.s32.totalorder %s66, %s67
      %p81 = scmp.eq.s32.totalorder %s33, 1
      %p82 = por %p80, %p81
      %p84 = scmp.ne.s32.totalorder %s67, %s83
      %p85 = scmp.eq.s32.totalorder %s33, 0
      %p86 = por %p84, %p85
      %s87 = ssub.s32 %s27, %s34
      %p88 = scmp.eq.s32.totalorder %s87, 0
      %s90 = sadd.s32 %s89, 1
      %s91 = scalar_select %p88, %s89, %s90
      %p94 = pneg %p88
      %p95 = scmp.eq.s32.totalorder %s27, 1
      %p96 = por %p94, %p95
      %p97 = scmp.ne.s32.totalorder %s89, %s92
      %p98 = scmp.eq.s32.totalorder %s27, 0
      %p99 = por %p97, %p98
      %p100 = scmp.ne.s32.totalorder %s89, %s92
      %p101 = scmp.eq.s32.totalorder %s32, 1
      %p102 = por %p100, %p101
      %p103 = scmp.ne.s32.totalorder %s92, %s93
      %p104 = scmp.eq.s32.totalorder %s32, 0
      %p105 = por %p103, %p104
      %p106 = scmp.ne.s32.totalorder %s92, %s93
      %p107 = scmp.eq.s32.totalorder %s33, 1
      %p108 = por %p106, %p107
      %p110 = scmp.ne.s32.totalorder %s93, %s109
      %p111 = scmp.eq.s32.totalorder %s33, 0
      %p112 = por %p110, %p111
      %s114 = sadd.s32 %s113, 1
      %p117 = scmp.eq.s32.totalorder %s27, 1
      %p118 = scmp.ne.s32.totalorder %s113, %s115
      %p119 = scmp.eq.s32.totalorder %s27, 0
      %p120 = por %p118, %p119
      %p121 = scmp.ne.s32.totalorder %s113, %s115
      %p122 = scmp.eq.s32.totalorder %s32, 1
      %p123 = por %p121, %p122
      %p124 = scmp.ne.s32.totalorder %s115, %s116
      %p125 = scmp.eq.s32.totalorder %s32, 0
      %p126 = por %p124, %p125
      %p127 = scmp.ne.s32.totalorder %s115, %s116
      %p128 = scmp.eq.s32.totalorder %s33, 1
      %p129 = por %p127, %p128
      %p131 = scmp.ne.s32.totalorder %s116, %s130
      %p132 = scmp.eq.s32.totalorder %s33, 0
      %p133 = por %p131, %p132
      %s135 = sadd.s32 %s134, 1
      %p138 = scmp.eq.s32.totalorder %s27, 1
      %p139 = scmp.ne.s32.totalorder %s134, %s136
      %p140 = scmp.eq.s32.totalorder %s27, 0
      %p141 = por %p139, %p140
      %p142 = scmp.ne.s32.totalorder %s134, %s136
      %p143 = scmp.eq.s32.totalorder %s32, 1
      %p144 = por %p142, %p143
      %p145 = scmp.ne.s32.totalorder %s136, %s137
      %p146 = scmp.eq.s32.totalorder %s32, 0
      %p147 = por %p145, %p146
      %p148 = scmp.ne.s32.totalorder %s136, %s137
      %p149 = scmp.eq.s32.totalorder %s33, 1
      %p150 = por %p148, %p149
      %p152 = scmp.ne.s32.totalorder %s137, %s151
      %p153 = scmp.eq.s32.totalorder %s33, 0
      %p154 = por %p152, %p153
      %s156 = sadd.s32 %s155, 1
      %p159 = scmp.eq.s32.totalorder %s27, 1
      %p160 = scmp.ne.s32.totalorder %s155, %s157
      %p161 = scmp.eq.s32.totalorder %s27, 0
      %p162 = por %p160, %p161
      %p163 = scmp.ne.s32.totalorder %s155, %s157
      %p164 = scmp.eq.s32.totalorder %s32, 1
      %p165 = por %p163, %p164
      %p166 = scmp.ne.s32.totalorder %s157, %s158
      %p167 = scmp.eq.s32.totalorder %s32, 0
      %p168 = por %p166, %p167
      %p169 = scmp.ne.s32.totalorder %s157, %s158
      %p170 = scmp.eq.s32.totalorder %s33, 1
      %p171 = por %p169, %p170
      %p173 = scmp.ne.s32.totalorder %s158, %s172
      %p174 = scmp.eq.s32.totalorder %s33, 0
      %p175 = por %p173, %p174
      %s177 = sadd.s32 %s176, 1
      %p180 = scmp.eq.s32.totalorder %s27, 1
      %p181 = scmp.ne.s32.totalorder %s176, %s178
      %p182 = scmp.eq.s32.totalorder %s27, 0
      %p183 = por %p181, %p182
      %p184 = scmp.ne.s32.totalorder %s176, %s178
      %p185 = scmp.eq.s32.totalorder %s32, 1
      %p186 = por %p184, %p185
      %p187 = scmp.ne.s32.totalorder %s178, %s179
      %p188 = scmp.eq.s32.totalorder %s32, 0
      %p189 = por %p187, %p188
      %p190 = scmp.ne.s32.totalorder %s178, %s179
      %p191 = scmp.eq.s32.totalorder %s33, 1
      %p192 = por %p190, %p191
      %p194 = scmp.ne.s32.totalorder %s179, %s193
      %p195 = scmp.eq.s32.totalorder %s33, 0
      %p196 = por %p194, %p195
      %s198 = sadd.s32 %s197, 1
      %p201 = scmp.eq.s32.totalorder %s27, 1
      %p202 = scmp.ne.s32.totalorder %s197, %s199
      %p203 = scmp.eq.s32.totalorder %s27, 0
      %p204 = por %p202, %p203
      %p205 = scmp.ne.s32.totalorder %s197, %s199
      %p206 = scmp.eq.s32.totalorder %s32, 1
      %p207 = por %p205, %p206
      %p208 = scmp.ne.s32.totalorder %s199, %s200
      %p209 = scmp.eq.s32.totalorder %s32, 0
      %p210 = por %p208, %p209
      %p211 = scmp.ne.s32.totalorder %s199, %s200
      %p212 = scmp.eq.s32.totalorder %s33, 1
      %p213 = por %p211, %p212
      %p215 = scmp.ne.s32.totalorder %s200, %s214
      %p216 = scmp.eq.s32.totalorder %s33, 0
      %p217 = por %p215, %p216
      %s219 = sadd.s32 %s218, 1
      %p222 = scmp.eq.s32.totalorder %s27, 1
      %p223 = scmp.ne.s32.totalorder %s218, %s220
      %p224 = scmp.eq.s32.totalorder %s27, 0
      %p225 = por %p223, %p224
      %p226 = scmp.ne.s32.totalorder %s218, %s220
      %p227 = scmp.eq.s32.totalorder %s32, 1
      %p228 = por %p226, %p227
      %p229 = scmp.ne.s32.totalorder %s220, %s221
      %p230 = scmp.eq.s32.totalorder %s32, 0
      %p231 = por %p229, %p230
      %p232 = scmp.ne.s32.totalorder %s220, %s221
      %p233 = scmp.eq.s32.totalorder %s33, 1
      %p234 = por %p232, %p233
      %p236 = scmp.ne.s32.totalorder %s221, %s235
      %p237 = scmp.eq.s32.totalorder %s33, 0
      %p238 = por %p236, %p237
      %s240 = sadd.s32 %s239, 1
      %p243 = scmp.eq.s32.totalorder %s27, 1
      %p244 = scmp.ne.s32.totalorder %s239, %s241
      %p245 = scmp.eq.s32.totalorder %s27, 0
      %p246 = por %p244, %p245
      %p247 = scmp.ne.s32.totalorder %s239, %s241
      %p248 = scmp.eq.s32.totalorder %s32, 1
      %p249 = por %p247, %p248
      %p250 = scmp.ne.s32.totalorder %s241, %s242
      %p251 = scmp.eq.s32.totalorder %s32, 0
      %p252 = por %p250, %p251
      %p253 = scmp.ne.s32.totalorder %s241, %s242
      %p254 = scmp.eq.s32.totalorder %s33, 1
      %p255 = por %p253, %p254
      %p257 = scmp.ne.s32.totalorder %s242, %s256
      %p258 = scmp.eq.s32.totalorder %s33, 0
      %p259 = por %p257, %p258
      %s260 = ssub.s32 %s27, %s34
      %p261 = scmp.eq.s32.totalorder %s260, 0
      %s263 = sadd.s32 %s262, 1
      %s264 = scalar_select %p261, %s262, %s263
      %p267 = pneg %p261
      %p268 = scmp.eq.s32.totalorder %s27, 1
      %p269 = por %p267, %p268
      %p270 = scmp.ne.s32.totalorder %s262, %s265
      %p271 = scmp.eq.s32.totalorder %s27, 0
      %p272 = por %p270, %p271
      %p273 = scmp.ne.s32.totalorder %s262, %s265
      %p274 = scmp.eq.s32.totalorder %s32, 1
      %p275 = por %p273, %p274
      %p276 = scmp.ne.s32.totalorder %s265, %s266
      %p277 = scmp.eq.s32.totalorder %s32, 0
      %p278 = por %p276, %p277
      %p279 = scmp.ne.s32.totalorder %s265, %s266
      %p280 = scmp.eq.s32.totalorder %s33, 1
      %p281 = por %p279, %p280
      %p283 = scmp.ne.s32.totalorder %s266, %s282
      %p284 = scmp.eq.s32.totalorder %s33, 0
      %p285 = por %p283, %p284
      %s287 = sadd.s32 %s286, 1
      %p290 = scmp.eq.s32.totalorder %s27, 1
      %p291 = scmp.ne.s32.totalorder %s286, %s288
      %p292 = scmp.eq.s32.totalorder %s27, 0
      %p293 = por %p291, %p292
      %p294 = scmp.ne.s32.totalorder %s286, %s288
      %p295 = scmp.eq.s32.totalorder %s32, 1
      %p296 = por %p294, %p295
      %p297 = scmp.ne.s32.totalorder %s288, %s289
      %p298 = scmp.eq.s32.totalorder %s32, 0
      %p299 = por %p297, %p298
      %p300 = scmp.ne.s32.totalorder %s288, %s289
      %p301 = scmp.eq.s32.totalorder %s33, 1
      %p302 = por %p300, %p301
      %p304 = scmp.ne.s32.totalorder %s289, %s303
      %p305 = scmp.eq.s32.totalorder %s33, 0
      %p306 = por %p304, %p305
      %s308 = sadd.s32 %s307, 1
      %p311 = scmp.eq.s32.totalorder %s27, 1
      %p312 = scmp.ne.s32.totalorder %s307, %s309
      %p313 = scmp.eq.s32.totalorder %s27, 0
      %p314 = por %p312, %p313
      %p315 = scmp.ne.s32.totalorder %s307, %s309
      %p316 = scmp.eq.s32.totalorder %s32, 1
      %p317 = por %p315, %p316
      %p318 = scmp.ne.s32.totalorder %s309, %s310
      %p319 = scmp.eq.s32.totalorder %s32, 0
      %p320 = por %p318, %p319
      %p321 = scmp.ne.s32.totalorder %s309, %s310
      %p322 = scmp.eq.s32.totalorder %s33, 1
      %p323 = por %p321, %p322
      %p325 = scmp.ne.s32.totalorder %s310, %s324
      %p326 = scmp.eq.s32.totalorder %s33, 0
      %p327 = por %p325, %p326
      %p328 = scmp.le.s32.totalorder 1, %s27
      %p329 = scmp.lt.s32.totalorder %s27, 3
      %p330 = pnand %p328, %p329
      %p331 = pneg %p330
      // Predicated region
      $region9: #{tpu_custom_call.1} parent=5 // pred_check
        _
      $region10: #{tpu_custom_call.1} parent=5 // pred_check_branch
        %333 = sbr.rel (%p330) target = $region12
      $region11: #{tpu_custom_call.1} parent=5 // pred_region
        %s334 = ssub.s32 %s27, 1
        // Predicated region
        $region13: #{tpu_custom_call.1} parent=11 // pred_check
          %p335 = pneg %p126
        $region14: #{tpu_custom_call.1} parent=11 // pred_check_branch
          %337 = sbr.rel (%p335) target = $region16
        $region15: #{tpu_custom_call.1} parent=11 // pred_region
          %s339 = ssub.s32 1024, 1024
          %340 = vsyncadd [#allocation8], %s339
          %s341 = sshll.u32 [#allocation7], 4
          %s342 = int_to_ptr.vmem [resolvable:$true] %s341
          %347 = dma.hbm_to_vmem [thread:$0]  %s3, 1024, %s342, [#allocation8], 64, 64, 4
        $region16: #{tpu_custom_call.1} parent=11 // pred_fallthru
          _
        // Predicated region
        $region17: #{tpu_custom_call.1} parent=11 // pred_check
          %p348 = pneg %p147
        $region18: #{tpu_custom_call.1} parent=11 // pred_check_branch
          %350 = sbr.rel (%p348) target = $region20
        $region19: #{tpu_custom_call.1} parent=11 // pred_region
          %s352 = ssub.s32 3072, 3072
          %353 = vsyncadd [#allocation8], %s352
          %s354 = sshll.u32 [#allocation9], 4
          %s355 = int_to_ptr.vmem [resolvable:$true] %s354
          %360 = dma.hbm_to_vmem [thread:$0]  %s4, 3072, %s355, [#allocation8], 64, 64, 4
        $region20: #{tpu_custom_call.1} parent=11 // pred_fallthru
          _
        // Predicated region
        $region21: #{tpu_custom_call.1} parent=11 // pred_check
          %p361 = pneg %p168
        $region22: #{tpu_custom_call.1} parent=11 // pred_check_branch
          %363 = sbr.rel (%p361) target = $region24
        $region23: #{tpu_custom_call.1} parent=11 // pred_region
          _
        $region24: #{tpu_custom_call.1} parent=11 // pred_fallthru
          _
        // Predicated region
        $region25: #{tpu_custom_call.1} parent=11 // pred_check
          %p364 = pneg %p189
        $region26: #{tpu_custom_call.1} parent=11 // pred_check_branch
          %366 = sbr.rel (%p364) target = $region28
        $region27: #{tpu_custom_call.1} parent=11 // pred_region
          _
        $region28: #{tpu_custom_call.1} parent=11 // pred_fallthru
          _
        // Predicated region
        $region29: #{tpu_custom_call.1} parent=11 // pred_check
          %p367 = pneg %p210
        $region30: #{tpu_custom_call.1} parent=11 // pred_check_branch
          %369 = sbr.rel (%p367) target = $region32
        $region31: #{tpu_custom_call.1} parent=11 // pred_region
          _
        $region32: #{tpu_custom_call.1} parent=11 // pred_fallthru
          _
        // Predicated region
        $region33: #{tpu_custom_call.1} parent=11 // pred_check
          %p370 = pneg %p231
        $region34: #{tpu_custom_call.1} parent=11 // pred_check_branch
          %372 = sbr.rel (%p370) target = $region36
        $region35: #{tpu_custom_call.1} parent=11 // pred_region
          _
        $region36: #{tpu_custom_call.1} parent=11 // pred_fallthru
          _
        // Predicated region
        $region37: #{tpu_custom_call.1} parent=11 // pred_check
          %p373 = pneg %p252
        $region38: #{tpu_custom_call.1} parent=11 // pred_check_branch
          %375 = sbr.rel (%p373) target = $region40
        $region39: #{tpu_custom_call.1} parent=11 // pred_region
          _
        $region40: #{tpu_custom_call.1} parent=11 // pred_fallthru
          _
      $region12: #{tpu_custom_call.1} parent=5 // pred_fallthru
        _
      %p376 = scmp.lt.s32.totalorder %s27, 2
      // Predicated region
      $region41: #{tpu_custom_call.1} parent=5 // pred_check
        %p377 = pneg %p376
      $region42: #{tpu_custom_call.1} parent=5 // pred_check_branch
        %379 = sbr.rel (%p377) target = $region44
      $region43: #{tpu_custom_call.1} parent=5 // pred_region
        // Predicated region
        $region45: #{tpu_custom_call.1} parent=43 // pred_check
          %p380 = pneg %p47
        $region46: #{tpu_custom_call.1} parent=43 // pred_check_branch
          %382 = sbr.rel (%p380) target = $region48
        $region47: #{tpu_custom_call.1} parent=43 // pred_region
          %s383 = smul.u32 16, %s27
          %p384 = scmp.lt.s32.totalorder %s383, 31
          %s385 = scalar_select %p384, %s383, 31
          %s386 = smul.addr %s385, 8
          %s387 = scalar_lea.vmem %s0, %s386
          %s388 = smul.u32 16, %s27
        $region48: #{tpu_custom_call.1} parent=43 // pred_fallthru
          _
        // Predicated region
        $region49: #{tpu_custom_call.1} parent=43 // pred_check
          %p389 = pneg %p73
        $region50: #{tpu_custom_call.1} parent=43 // pred_check_branch
          %391 = sbr.rel (%p389) target = $region52
        $region51: #{tpu_custom_call.1} parent=43 // pred_region
          %s392 = smul.u32 16, %s27
          %p393 = scmp.lt.s32.totalorder %s392, 31
          %s394 = scalar_select %p393, %s392, 31
          %s395 = smul.addr %s394, 8
          %s396 = scalar_lea.vmem %s1, %s395
          %s397 = smul.u32 16, %s27
        $region52: #{tpu_custom_call.1} parent=43 // pred_fallthru
          _
        // Predicated region
        $region53: #{tpu_custom_call.1} parent=43 // pred_check
          %p398 = pneg %p99
        $region54: #{tpu_custom_call.1} parent=43 // pred_check_branch
          %400 = sbr.rel (%p398) target = $region56
        $region55: #{tpu_custom_call.1} parent=43 // pred_region
          %s401 = sand.u32 %s89, 1
          %s402 = scalar_lea.sflag [#allocation5], %s401
          %s403 = sand.u32 %s89, 1
          %s404 = smul.addr %s403, 64
          %s405 = scalar_lea.vmem [#allocation4], %s404
          %s406 = smul.u32 16, %s27
          %s408 = ssub.s32 1024, 1024
          %409 = vsyncadd %s402, %s408
          %s410 = smul.addr %s406, 64
          %s411 = scalar_lea.hbm %s2, %s410
          %s412 = sshll.u32 %s405, 4
          %s413 = int_to_ptr.vmem [resolvable:$true] %s412
          %418 = dma.hbm_to_vmem [thread:$0]  %s411, 1024, %s413, %s402, 64, 64, 4
        $region56: #{tpu_custom_call.1} parent=43 // pred_fallthru
          _
      $region44: #{tpu_custom_call.1} parent=5 // pred_fallthru
        _
      %p419 = scmp.le.s32.totalorder 1, %s27
      %p420 = scmp.lt.s32.totalorder %s27, 3
      %p421 = pnand %p419, %p420
      %p422 = pneg %p421
      // Predicated region
      $region57: #{tpu_custom_call.1} parent=5 // pred_check
        _
      $region58: #{tpu_custom_call.1} parent=5 // pred_check_branch
        %424 = sbr.rel (%p421) target = $region60
      $region59: #{tpu_custom_call.1} parent=5 // pred_region
        %s425 = ssub.s32 %s27, 1
        %s426 = sand.u32 %s92, 1
        %s427 = scalar_lea.sflag [#allocation5], %s426
        %s428 = sand.u32 %s92, 1
        %s429 = smul.addr %s428, 64
        %s430 = scalar_lea.vmem [#allocation4], %s429
        // Predicated region
        $region61: #{tpu_custom_call.1} parent=59 // pred_check
          %p431 = pneg %p105
        $region62: #{tpu_custom_call.1} parent=59 // pred_check_branch
          %433 = sbr.rel (%p431) target = $region64
        $region63: #{tpu_custom_call.1} parent=59 // pred_region
          %434 = dma.done %s427, 1024
        $region64: #{tpu_custom_call.1} parent=59 // pred_fallthru
          _
        // Predicated region
        $region65: #{tpu_custom_call.1} parent=59 // pred_check
          %p435 = pneg %p126
        $region66: #{tpu_custom_call.1} parent=59 // pred_check_branch
          %437 = sbr.rel (%p435) target = $region68
        $region67: #{tpu_custom_call.1} parent=59 // pred_region
          %438 = dma.done [#allocation8], 1024
        $region68: #{tpu_custom_call.1} parent=59 // pred_fallthru
          _
        // Predicated region
        $region69: #{tpu_custom_call.1} parent=59 // pred_check
          %p439 = pneg %p147
        $region70: #{tpu_custom_call.1} parent=59 // pred_check_branch
          %441 = sbr.rel (%p439) target = $region72
        $region71: #{tpu_custom_call.1} parent=59 // pred_region
          %442 = dma.done [#allocation8], 3072
        $region72: #{tpu_custom_call.1} parent=59 // pred_fallthru
          _
        %s443 = smul.u32 16, %s32
        %p444 = scmp.lt.s32.totalorder %s443, 31
        %s445 = scalar_select %p444, %s443, 31
        %s446 = smul.addr %s445, 8
        %s447 = scalar_lea.vmem %s0, %s446
        %p448 = pneg %p53
        %p449 = pneg %p50
        %s450 = smul.u32 16, %s32
        %p451 = scmp.lt.s32.totalorder %s450, 31
        %s452 = scalar_select %p451, %s450, 31
        %s453 = smul.addr %s452, 8
        %s454 = scalar_lea.vmem %s1, %s453
        %p455 = pneg %p79
        %p456 = pneg %p76
        %s457 = sand.u32 %s92, 1
        %s458 = scalar_lea.sflag [#allocation5], %s457
        %s459 = sand.u32 %s92, 1
        %s460 = smul.addr %s459, 64
        %s461 = scalar_lea.vmem [#allocation4], %s460
        %p462 = pneg %p105
        %p463 = pneg %p102
        %p464 = pneg %p126
        %p465 = pneg %p123
        %p466 = pneg %p147
        %p467 = pneg %p144
        %p468 = pneg %p168
        %p469 = pneg %p165
        %p470 = pneg %p189
        %p471 = pneg %p186
        %p472 = pneg %p210
        %p473 = pneg %p207
        %p474 = pneg %p231
        %p475 = pneg %p228
        %p476 = pneg %p252
        %p477 = pneg %p249
        %p478 = pneg %p278
        %p479 = pneg %p275
        %s480 = sand.u32 %s265, 1
        %s481 = scalar_lea.sflag [#allocation6], %s480
        %s482 = sand.u32 %s265, 1
        %s483 = smul.addr %s482, 128
        %s484 = scalar_lea.vmem [#allocation10], %s483
        %p485 = pneg %p299
        %p486 = pneg %p296
        %p487 = pneg %p320
        %p488 = pneg %p317
        %s489 = smul.u32 16, %s32
        %p490 = scmp.lt.s32.totalorder %s489, 31
        %s491 = scalar_select %p490, %s489, 31
        %s492 = smul.addr %s491, 8
        %s493 = scalar_lea.vmem %s0, %s492
        %s494 = smul.u32 16, %s32
        %s495 = smul.u32 16, %s32
        %p496 = scmp.lt.s32.totalorder %s495, 31
        %s497 = scalar_select %p496, %s495, 31
        %s498 = smul.addr %s497, 8
        %s499 = scalar_lea.vmem %s1, %s498
        %s500 = smul.u32 16, %s32
        %s501 = smul.u32 16, %s32
        %s502 = smul.u32 16, %s32
        %p504 = scmp.eq.s32.totalorder %s32, 0
        // Predicated region
        $region73: #{tpu_custom_call.1} parent=59 // pred_check
          %p505 = pneg %p504
        $region74: #{tpu_custom_call.1} parent=59 // pred_check_branch
          %507 = sbr.rel (%p505) target = $region76
        $region75: #{tpu_custom_call.1} parent=59 // pred_region
          %508 = vst [vmem:[#allocation2] sm:$0xff] 0.0
          %509 = vst [vmem:[#allocation2 + $0x8] sm:$0xff] 0.0
          %510 = vst [vmem:[#allocation2 + $0x10] sm:$0xff] 0.0
          %511 = vst [vmem:[#allocation2 + $0x18] sm:$0xff] 0.0
          %512 = vst [vmem:[#allocation2 + $0x20] sm:$0xff] 0.0
          %513 = vst [vmem:[#allocation2 + $0x28] sm:$0xff] 0.0
          %514 = vst [vmem:[#allocation2 + $0x30] sm:$0xff] 0.0
          %515 = vst [vmem:[#allocation2 + $0x38] sm:$0xff] 0.0
          %516 = vst [vmem:[#allocation2 + $0x40] sm:$0xff] 0.0
          %517 = vst [vmem:[#allocation2 + $0x48] sm:$0xff] 0.0
          %518 = vst [vmem:[#allocation2 + $0x50] sm:$0xff] 0.0
          %519 = vst [vmem:[#allocation2 + $0x58] sm:$0xff] 0.0
          %520 = vst [vmem:[#allocation2 + $0x60] sm:$0xff] 0.0
          %521 = vst [vmem:[#allocation2 + $0x68] sm:$0xff] 0.0
          %522 = vst [vmem:[#allocation2 + $0x70] sm:$0xff] 0.0
          %523 = vst [vmem:[#allocation2 + $0x78] sm:$0xff] 0.0
          %524 = vst [vmem:[#allocation3] sm:$0x1] 0.0
        $region76: #{tpu_custom_call.1} parent=59 // pred_fallthru
          _
        %v525 = vld [vmem:[#allocation7] sm:$0xf]
        %v526 = vld [vmem:[#allocation7 + $0x4] sm:$0xf]
        %v527 = vld [vmem:[#allocation7 + $0x8] sm:$0xf]
        %v528 = vld [vmem:[#allocation7 + $0xc] sm:$0xf]
        %v529 = vld [vmem:[#allocation7 + $0x10] sm:$0xf]
        %v530 = vld [vmem:[#allocation7 + $0x14] sm:$0xf]
        %v531 = vld [vmem:[#allocation7 + $0x18] sm:$0xf]
        %v532 = vld [vmem:[#allocation7 + $0x1c] sm:$0xf]
        %v533 = vld [vmem:[#allocation7 + $0x20] sm:$0xf]
        %v534 = vld [vmem:[#allocation7 + $0x24] sm:$0xf]
        %v535 = vld [vmem:[#allocation7 + $0x28] sm:$0xf]
        %v536 = vld [vmem:[#allocation7 + $0x2c] sm:$0xf]
        %v537 = vld [vmem:[#allocation7 + $0x30] sm:$0xf]
        %v538 = vld [vmem:[#allocation7 + $0x34] sm:$0xf]
        %v539 = vld [vmem:[#allocation7 + $0x38] sm:$0xf]
        %v540 = vld [vmem:[#allocation7 + $0x3c] sm:$0xf]
        %v541 = vlaneseq
        %v542 = vand.u32 %v541, 127
        %v543 = vld [vmem:[%s493] sm:$0xff]
        %v544 = vld [vmem:[%s493 + $0x8] sm:$0xff]
        %v545 = vld [vmem:[%s493 + $0x10] sm:$0xff]
        %v546 = vld [vmem:[%s493 + $0x18] sm:$0xff]
        %v547 = vld [vmem:[%s493 + $0x20] sm:$0xff]
        %v548 = vld [vmem:[%s493 + $0x28] sm:$0xff]
        %v549 = vld [vmem:[%s493 + $0x30] sm:$0xff]
        %v550 = vld [vmem:[%s493 + $0x38] sm:$0xff]
        %v551 = vld [vmem:[%s493 + $0x40] sm:$0xff]
        %v552 = vld [vmem:[%s493 + $0x48] sm:$0xff]
        %v553 = vld [vmem:[%s493 + $0x50] sm:$0xff]
        %v554 = vld [vmem:[%s493 + $0x58] sm:$0xff]
        %v555 = vld [vmem:[%s493 + $0x60] sm:$0xff]
        %v556 = vld [vmem:[%s493 + $0x68] sm:$0xff]
        %v557 = vld [vmem:[%s493 + $0x70] sm:$0xff]
        %v558 = vld [vmem:[%s493 + $0x78] sm:$0xff]
        %559 = vset.pattern.permute.xlu0 0
        %560 = vperm.xlu0 %559, %v543
        %v561 = vpop.permute.xlu0 %560
        %562 = vset.pattern.permute.xlu0 0
        %563 = vperm.xlu0 %562, %v544
        %v564 = vpop.permute.xlu0 %563
        %565 = vset.pattern.permute.xlu0 0
        %566 = vperm.xlu0 %565, %v545
        %v567 = vpop.permute.xlu0 %566
        %568 = vset.pattern.permute.xlu0 0
        %569 = vperm.xlu0 %568, %v546
        %v570 = vpop.permute.xlu0 %569
        %571 = vset.pattern.permute.xlu0 0
        %572 = vperm.xlu0 %571, %v547
        %v573 = vpop.permute.xlu0 %572
        %574 = vset.pattern.permute.xlu0 0
        %575 = vperm.xlu0 %574, %v548
        %v576 = vpop.permute.xlu0 %575
        %577 = vset.pattern.permute.xlu0 0
        %578 = vperm.xlu0 %577, %v549
        %v579 = vpop.permute.xlu0 %578
        %580 = vset.pattern.permute.xlu0 0
        %581 = vperm.xlu0 %580, %v550
        %v582 = vpop.permute.xlu0 %581
        %583 = vset.pattern.permute.xlu0 0
        %584 = vperm.xlu0 %583, %v551
        %v585 = vpop.permute.xlu0 %584
        %586 = vset.pattern.permute.xlu0 0
        %587 = vperm.xlu0 %586, %v552
        %v588 = vpop.permute.xlu0 %587
        %589 = vset.pattern.permute.xlu0 0
        %590 = vperm.xlu0 %589, %v553
        %v591 = vpop.permute.xlu0 %590
        %592 = vset.pattern.permute.xlu0 0
        %593 = vperm.xlu0 %592, %v554
        %v594 = vpop.permute.xlu0 %593
        %595 = vset.pattern.permute.xlu0 0
        %596 = vperm.xlu0 %595, %v555
        %v597 = vpop.permute.xlu0 %596
        %598 = vset.pattern.permute.xlu0 0
        %599 = vperm.xlu0 %598, %v556
        %v600 = vpop.permute.xlu0 %599
        %601 = vset.pattern.permute.xlu0 0
        %602 = vperm.xlu0 %601, %v557
        %v603 = vpop.permute.xlu0 %602
        %604 = vset.pattern.permute.xlu0 0
        %605 = vperm.xlu0 %604, %v558
        %v606 = vpop.permute.xlu0 %605
        %vm607 = vcmp.eq.s32.totalorder %v542, %v561
        %vm608 = vcmp.eq.s32.totalorder %v542, %v564
        %vm609 = vcmp.eq.s32.totalorder %v542, %v567
        %vm610 = vcmp.eq.s32.totalorder %v542, %v570
        %vm611 = vcmp.eq.s32.totalorder %v542, %v573
        %vm612 = vcmp.eq.s32.totalorder %v542, %v576
        %vm613 = vcmp.eq.s32.totalorder %v542, %v579
        %vm614 = vcmp.eq.s32.totalorder %v542, %v582
        %vm615 = vcmp.eq.s32.totalorder %v542, %v585
        %vm616 = vcmp.eq.s32.totalorder %v542, %v588
        %vm617 = vcmp.eq.s32.totalorder %v542, %v591
        %vm618 = vcmp.eq.s32.totalorder %v542, %v594
        %vm619 = vcmp.eq.s32.totalorder %v542, %v597
        %vm620 = vcmp.eq.s32.totalorder %v542, %v600
        %vm621 = vcmp.eq.s32.totalorder %v542, %v603
        %vm622 = vcmp.eq.s32.totalorder %v542, %v606
        %v623 = vsel %vm607, 1.0, 0.0
        %v624 = vsel %vm608, 1.0, 0.0
        %v625 = vsel %vm609, 1.0, 0.0
        %v626 = vsel %vm610, 1.0, 0.0
        %v627 = vsel %vm611, 1.0, 0.0
        %v628 = vsel %vm612, 1.0, 0.0
        %v629 = vsel %vm613, 1.0, 0.0
        %v630 = vsel %vm614, 1.0, 0.0
        %v631 = vsel %vm615, 1.0, 0.0
        %v632 = vsel %vm616, 1.0, 0.0
        %v633 = vsel %vm617, 1.0, 0.0
        %v634 = vsel %vm618, 1.0, 0.0
        %v635 = vsel %vm619, 1.0, 0.0
        %v636 = vsel %vm620, 1.0, 0.0
        %v637 = vsel %vm621, 1.0, 0.0
        %v638 = vsel %vm622, 1.0, 0.0
        %v639 = vpack.c.bf16 %v624, %v623
        %v640 = vpack.c.bf16 %v626, %v625
        %v641 = vpack.c.bf16 %v628, %v627
        %v642 = vpack.c.bf16 %v630, %v629
        %v643 = vpack.c.bf16 %v632, %v631
        %v644 = vpack.c.bf16 %v634, %v633
        %v645 = vpack.c.bf16 %v636, %v635
        %v646 = vpack.c.bf16 %v638, %v637
        %v647 = vld [vmem:[%s499] sm:$0xff]
        %v648 = vld [vmem:[%s499 + $0x8] sm:$0xff]
        %v649 = vld [vmem:[%s499 + $0x10] sm:$0xff]
        %v650 = vld [vmem:[%s499 + $0x18] sm:$0xff]
        %v651 = vld [vmem:[%s499 + $0x20] sm:$0xff]
        %v652 = vld [vmem:[%s499 + $0x28] sm:$0xff]
        %v653 = vld [vmem:[%s499 + $0x30] sm:$0xff]
        %v654 = vld [vmem:[%s499 + $0x38] sm:$0xff]
        %v655 = vld [vmem:[%s499 + $0x40] sm:$0xff]
        %v656 = vld [vmem:[%s499 + $0x48] sm:$0xff]
        %v657 = vld [vmem:[%s499 + $0x50] sm:$0xff]
        %v658 = vld [vmem:[%s499 + $0x58] sm:$0xff]
        %v659 = vld [vmem:[%s499 + $0x60] sm:$0xff]
        %v660 = vld [vmem:[%s499 + $0x68] sm:$0xff]
        %v661 = vld [vmem:[%s499 + $0x70] sm:$0xff]
        %v662 = vld [vmem:[%s499 + $0x78] sm:$0xff]
        %663 = vset.pattern.permute.xlu0 0
        %664 = vperm.xlu0 %663, %v647
        %v665 = vpop.permute.xlu0 %664
        %666 = vset.pattern.permute.xlu0 0
        %667 = vperm.xlu0 %666, %v648
        %v668 = vpop.permute.xlu0 %667
        %669 = vset.pattern.permute.xlu0 0
        %670 = vperm.xlu0 %669, %v649
        %v671 = vpop.permute.xlu0 %670
        %672 = vset.pattern.permute.xlu0 0
        %673 = vperm.xlu0 %672, %v650
        %v674 = vpop.permute.xlu0 %673
        %675 = vset.pattern.permute.xlu0 0
        %676 = vperm.xlu0 %675, %v651
        %v677 = vpop.permute.xlu0 %676
        %678 = vset.pattern.permute.xlu0 0
        %679 = vperm.xlu0 %678, %v652
        %v680 = vpop.permute.xlu0 %679
        %681 = vset.pattern.permute.xlu0 0
        %682 = vperm.xlu0 %681, %v653
        %v683 = vpop.permute.xlu0 %682
        %684 = vset.pattern.permute.xlu0 0
        %685 = vperm.xlu0 %684, %v654
        %v686 = vpop.permute.xlu0 %685
        %687 = vset.pattern.permute.xlu0 0
        %688 = vperm.xlu0 %687, %v655
        %v689 = vpop.permute.xlu0 %688
        %690 = vset.pattern.permute.xlu0 0
        %691 = vperm.xlu0 %690, %v656
        %v692 = vpop.permute.xlu0 %691
        %693 = vset.pattern.permute.xlu0 0
        %694 = vperm.xlu0 %693, %v657
        %v695 = vpop.permute.xlu0 %694
        %696 = vset.pattern.permute.xlu0 0
        %697 = vperm.xlu0 %696, %v658
        %v698 = vpop.permute.xlu0 %697
        %699 = vset.pattern.permute.xlu0 0
        %700 = vperm.xlu0 %699, %v659
        %v701 = vpop.permute.xlu0 %700
        %702 = vset.pattern.permute.xlu0 0
        %703 = vperm.xlu0 %702, %v660
        %v704 = vpop.permute.xlu0 %703
        %705 = vset.pattern.permute.xlu0 0
        %706 = vperm.xlu0 %705, %v661
        %v707 = vpop.permute.xlu0 %706
        %708 = vset.pattern.permute.xlu0 0
        %709 = vperm.xlu0 %708, %v662
        %v710 = vpop.permute.xlu0 %709
        %vm711 = vcmp.eq.s32.totalorder %v542, %v665
        %vm712 = vcmp.eq.s32.totalorder %v542, %v668
        %vm713 = vcmp.eq.s32.totalorder %v542, %v671
        %vm714 = vcmp.eq.s32.totalorder %v542, %v674
        %vm715 = vcmp.eq.s32.totalorder %v542, %v677
        %vm716 = vcmp.eq.s32.totalorder %v542, %v680
        %vm717 = vcmp.eq.s32.totalorder %v542, %v683
        %vm718 = vcmp.eq.s32.totalorder %v542, %v686
        %vm719 = vcmp.eq.s32.totalorder %v542, %v689
        %vm720 = vcmp.eq.s32.totalorder %v542, %v692
        %vm721 = vcmp.eq.s32.totalorder %v542, %v695
        %vm722 = vcmp.eq.s32.totalorder %v542, %v698
        %vm723 = vcmp.eq.s32.totalorder %v542, %v701
        %vm724 = vcmp.eq.s32.totalorder %v542, %v704
        %vm725 = vcmp.eq.s32.totalorder %v542, %v707
        %vm726 = vcmp.eq.s32.totalorder %v542, %v710
        %v727 = vsel %vm711, 1.0, 0.0
        %v728 = vsel %vm712, 1.0, 0.0
        %v729 = vsel %vm713, 1.0, 0.0
        %v730 = vsel %vm714, 1.0, 0.0
        %v731 = vsel %vm715, 1.0, 0.0
        %v732 = vsel %vm716, 1.0, 0.0
        %v733 = vsel %vm717, 1.0, 0.0
        %v734 = vsel %vm718, 1.0, 0.0
        %v735 = vsel %vm719, 1.0, 0.0
        %v736 = vsel %vm720, 1.0, 0.0
        %v737 = vsel %vm721, 1.0, 0.0
        %v738 = vsel %vm722, 1.0, 0.0
        %v739 = vsel %vm723, 1.0, 0.0
        %v740 = vsel %vm724, 1.0, 0.0
        %v741 = vsel %vm725, 1.0, 0.0
        %v742 = vsel %vm726, 1.0, 0.0
        %v743 = vpack.c.bf16 %v728, %v727
        %v744 = vpack.c.bf16 %v730, %v729
        %v745 = vpack.c.bf16 %v732, %v731
        %v746 = vpack.c.bf16 %v734, %v733
        %v747 = vpack.c.bf16 %v736, %v735
        %v748 = vpack.c.bf16 %v738, %v737
        %v749 = vpack.c.bf16 %v740, %v739
        %v750 = vpack.c.bf16 %v742, %v741
        %v767 = vunpack.c.l.b16 %v525
        %v768 = vunpack.c.l.b16 %v526
        %v769 = vunpack.c.l.b16 %v527
        %v770 = vunpack.c.l.b16 %v528
        %v771 = vunpack.c.l.b16 %v529
        %v772 = vunpack.c.l.b16 %v530
        %v773 = vunpack.c.l.b16 %v531
        %v774 = vunpack.c.l.b16 %v532
        %v775 = vunpack.c.l.b16 %v533
        %v776 = vunpack.c.l.b16 %v534
        %v777 = vunpack.c.l.b16 %v535
        %v778 = vunpack.c.l.b16 %v536
        %v779 = vunpack.c.l.b16 %v537
        %v780 = vunpack.c.l.b16 %v538
        %v781 = vunpack.c.l.b16 %v539
        %v782 = vunpack.c.l.b16 %v540
        %v783 = vpack.c.b16 %v768, %v767
        %v784 = vpack.c.b16 %v770, %v769
        %v785 = vpack.c.b16 %v772, %v771
        %v786 = vpack.c.b16 %v774, %v773
        %v787 = vpack.c.b16 %v776, %v775
        %v788 = vpack.c.b16 %v778, %v777
        %v789 = vpack.c.b16 %v780, %v779
        %v790 = vpack.c.b16 %v782, %v781
        %799 = vmatprep.subr.bf16.mxu0 0
        %800 = vmatpush1.bf16.msra.mxu0 %v790
        %801 = vmatprep.subr.bf16.mxu0 0
        %802 = vmatpush1.bf16.msra.mxu0 %v789
        %803 = vmatprep.subr.bf16.mxu0 0
        %804 = vmatpush1.bf16.msra.mxu0 %v788
        %805 = vmatprep.subr.bf16.mxu0 0
        %806 = vmatpush1.bf16.msra.mxu0 %v787
        %807 = vmatprep.subr.bf16.mxu0 0
        %808 = vmatpush1.bf16.msra.mxu0 %v786
        %809 = vmatprep.subr.bf16.mxu0 0
        %810 = vmatpush1.bf16.msra.mxu0 %v785
        %811 = vmatprep.subr.bf16.mxu0 0
        %812 = vmatpush1.bf16.msra.mxu0 %v784
        %813 = vmatprep.subr.bf16.mxu0 0
        %814 = vmatpush1.bf16.msra.mxu0 %v783
        %815 = vmatprep.subr.bf16.mxu0 0
        %816 = vmatpush2.bf16.msra.mxu0 0
        %817 = vmatprep.subr.bf16.mxu0 0
        %818 = vmatpush2.bf16.msra.mxu0 0
        %819 = vmatprep.subr.bf16.mxu0 0
        %820 = vmatpush2.bf16.msra.mxu0 0
        %821 = vmatprep.subr.bf16.mxu0 0
        %822 = vmatpush2.bf16.msra.mxu0 0
        %823 = vmatprep.subr.bf16.mxu0 0
        %824 = vmatpush2.bf16.msra.mxu0 0
        %825 = vmatprep.subr.bf16.mxu0 0
        %826 = vmatpush2.bf16.msra.mxu0 0
        %827 = vmatprep.subr.bf16.mxu0 0
        %828 = vmatpush2.bf16.msra.mxu0 0
        %829 = vmatprep.subr.bf16.mxu0 0
        %830 = vmatpush2.bf16.msra.mxu0 0
        %831 = vmatprep.mubr.bf16.mxu0 0
        %832 = vmatmul.mubr.bf16.gmra.mxu0 %v639
        %v833 = vpop.f32.mrf.mxu0
        %v834 = vadd.f32 0.0, %v833
        %v835 = vpop.f32.mrf.mxu0
        %v836 = vpop.f32.mrf.mxu0
        %v837 = vadd.f32 0.0, %v836
        %v838 = vpop.f32.mrf.mxu0
        %839 = vmatprep.mubr.bf16.mxu0 0
        %840 = vmatmul.mubr.bf16.gmra.mxu0 %v640
        %v841 = vpop.f32.mrf.mxu0
        %v842 = vadd.f32 0.0, %v841
        %v843 = vpop.f32.mrf.mxu0
        %v844 = vpop.f32.mrf.mxu0
        %v845 = vadd.f32 0.0, %v844
        %v846 = vpop.f32.mrf.mxu0
        %847 = vmatprep.mubr.bf16.mxu0 0
        %848 = vmatmul.mubr.bf16.gmra.mxu0 %v641
        %v849 = vpop.f32.mrf.mxu0
        %v850 = vadd.f32 0.0, %v849
        %v851 = vpop.f32.mrf.mxu0
        %v852 = vpop.f32.mrf.mxu0
        %v853 = vadd.f32 0.0, %v852
        %v854 = vpop.f32.mrf.mxu0
        %855 = vmatprep.mubr.bf16.mxu0 0
        %856 = vmatmul.mubr.bf16.gmra.mxu0 %v642
        %v857 = vpop.f32.mrf.mxu0
        %v858 = vadd.f32 0.0, %v857
        %v859 = vpop.f32.mrf.mxu0
        %v860 = vpop.f32.mrf.mxu0
        %v861 = vadd.f32 0.0, %v860
        %v862 = vpop.f32.mrf.mxu0
        %863 = vmatprep.mubr.bf16.mxu0 0
        %864 = vmatmul.mubr.bf16.gmra.mxu0 %v643
        %v865 = vpop.f32.mrf.mxu0
        %v866 = vadd.f32 0.0, %v865
        %v867 = vpop.f32.mrf.mxu0
        %v868 = vpop.f32.mrf.mxu0
        %v869 = vadd.f32 0.0, %v868
        %v870 = vpop.f32.mrf.mxu0
        %871 = vmatprep.mubr.bf16.mxu0 0
        %872 = vmatmul.mubr.bf16.gmra.mxu0 %v644
        %v873 = vpop.f32.mrf.mxu0
        %v874 = vadd.f32 0.0, %v873
        %v875 = vpop.f32.mrf.mxu0
        %v876 = vpop.f32.mrf.mxu0
        %v877 = vadd.f32 0.0, %v876
        %v878 = vpop.f32.mrf.mxu0
        %879 = vmatprep.mubr.bf16.mxu0 0
        %880 = vmatmul.mubr.bf16.gmra.mxu0 %v645
        %v881 = vpop.f32.mrf.mxu0
        %v882 = vadd.f32 0.0, %v881
        %v883 = vpop.f32.mrf.mxu0
        %v884 = vpop.f32.mrf.mxu0
        %v885 = vadd.f32 0.0, %v884
        %v886 = vpop.f32.mrf.mxu0
        %887 = vmatprep.mubr.bf16.mxu0 0
        %888 = vmatmul.mubr.bf16.gmra.mxu0 %v646
        %v889 = vpop.f32.mrf.mxu0
        %v890 = vadd.f32 0.0, %v889
        %v891 = vpop.f32.mrf.mxu0
        %v892 = vpop.f32.mrf.mxu0
        %v893 = vadd.f32 0.0, %v892
        %v894 = vpop.f32.mrf.mxu0
        %895 = vdwg.mxu0
        %v896 = vpack.c.bf16 %v837, %v834
        %v897 = vpack.c.bf16 %v845, %v842
        %v898 = vpack.c.bf16 %v853, %v850
        %v899 = vpack.c.bf16 %v861, %v858
        %v900 = vpack.c.bf16 %v869, %v866
        %v901 = vpack.c.bf16 %v877, %v874
        %v902 = vpack.c.bf16 %v885, %v882
        %v903 = vpack.c.bf16 %v893, %v890
        %904 = vmatprep.subr.bf16.mxu0 0
        %905 = vmatpush1.bf16.msra.mxu0 %v790
        %906 = vmatprep.subr.bf16.mxu0 0
        %907 = vmatpush1.bf16.msra.mxu0 %v789
        %908 = vmatprep.subr.bf16.mxu0 0
        %909 = vmatpush1.bf16.msra.mxu0 %v788
        %910 = vmatprep.subr.bf16.mxu0 0
        %911 = vmatpush1.bf16.msra.mxu0 %v787
        %912 = vmatprep.subr.bf16.mxu0 0
        %913 = vmatpush1.bf16.msra.mxu0 %v786
        %914 = vmatprep.subr.bf16.mxu0 0
        %915 = vmatpush1.bf16.msra.mxu0 %v785
        %916 = vmatprep.subr.bf16.mxu0 0
        %917 = vmatpush1.bf16.msra.mxu0 %v784
        %918 = vmatprep.subr.bf16.mxu0 0
        %919 = vmatpush1.bf16.msra.mxu0 %v783
        %920 = vmatprep.subr.bf16.mxu0 0
        %921 = vmatpush2.bf16.msra.mxu0 0
        %922 = vmatprep.subr.bf16.mxu0 0
        %923 = vmatpush2.bf16.msra.mxu0 0
        %924 = vmatprep.subr.bf16.mxu0 0
        %925 = vmatpush2.bf16.msra.mxu0 0
        %926 = vmatprep.subr.bf16.mxu0 0
        %927 = vmatpush2.bf16.msra.mxu0 0
        %928 = vmatprep.subr.bf16.mxu0 0
        %929 = vmatpush2.bf16.msra.mxu0 0
        %930 = vmatprep.subr.bf16.mxu0 0
        %931 = vmatpush2.bf16.msra.mxu0 0
        %932 = vmatprep.subr.bf16.mxu0 0
        %933 = vmatpush2.bf16.msra.mxu0 0
        %934 = vmatprep.subr.bf16.mxu0 0
        %935 = vmatpush2.bf16.msra.mxu0 0
        %936 = vmatprep.mubr.bf16.mxu0 0
        %937 = vmatmul.mubr.bf16.gmra.mxu0 %v743
        %v938 = vpop.f32.mrf.mxu0
        %v939 = vadd.f32 0.0, %v938
        %v940 = vpop.f32.mrf.mxu0
        %v941 = vpop.f32.mrf.mxu0
        %v942 = vadd.f32 0.0, %v941
        %v943 = vpop.f32.mrf.mxu0
        %944 = vmatprep.mubr.bf16.mxu0 0
        %945 = vmatmul.mubr.bf16.gmra.mxu0 %v744
        %v946 = vpop.f32.mrf.mxu0
        %v947 = vadd.f32 0.0, %v946
        %v948 = vpop.f32.mrf.mxu0
        %v949 = vpop.f32.mrf.mxu0
        %v950 = vadd.f32 0.0, %v949
        %v951 = vpop.f32.mrf.mxu0
        %952 = vmatprep.mubr.bf16.mxu0 0
        %953 = vmatmul.mubr.bf16.gmra.mxu0 %v745
        %v954 = vpop.f32.mrf.mxu0
        %v955 = vadd.f32 0.0, %v954
        %v956 = vpop.f32.mrf.mxu0
        %v957 = vpop.f32.mrf.mxu0
        %v958 = vadd.f32 0.0, %v957
        %v959 = vpop.f32.mrf.mxu0
        %960 = vmatprep.mubr.bf16.mxu0 0
        %961 = vmatmul.mubr.bf16.gmra.mxu0 %v746
        %v962 = vpop.f32.mrf.mxu0
        %v963 = vadd.f32 0.0, %v962
        %v964 = vpop.f32.mrf.mxu0
        %v965 = vpop.f32.mrf.mxu0
        %v966 = vadd.f32 0.0, %v965
        %v967 = vpop.f32.mrf.mxu0
        %968 = vmatprep.mubr.bf16.mxu0 0
        %969 = vmatmul.mubr.bf16.gmra.mxu0 %v747
        %v970 = vpop.f32.mrf.mxu0
        %v971 = vadd.f32 0.0, %v970
        %v972 = vpop.f32.mrf.mxu0
        %v973 = vpop.f32.mrf.mxu0
        %v974 = vadd.f32 0.0, %v973
        %v975 = vpop.f32.mrf.mxu0
        %976 = vmatprep.mubr.bf16.mxu0 0
        %977 = vmatmul.mubr.bf16.gmra.mxu0 %v748
        %v978 = vpop.f32.mrf.mxu0
        %v979 = vadd.f32 0.0, %v978
        %v980 = vpop.f32.mrf.mxu0
        %v981 = vpop.f32.mrf.mxu0
        %v982 = vadd.f32 0.0, %v981
        %v983 = vpop.f32.mrf.mxu0
        %984 = vmatprep.mubr.bf16.mxu0 0
        %985 = vmatmul.mubr.bf16.gmra.mxu0 %v749
        %v986 = vpop.f32.mrf.mxu0
        %v987 = vadd.f32 0.0, %v986
        %v988 = vpop.f32.mrf.mxu0
        %v989 = vpop.f32.mrf.mxu0
        %v990 = vadd.f32 0.0, %v989
        %v991 = vpop.f32.mrf.mxu0
        %992 = vmatprep.mubr.bf16.mxu0 0
        %993 = vmatmul.mubr.bf16.gmra.mxu0 %v750
        %v994 = vpop.f32.mrf.mxu0
        %v995 = vadd.f32 0.0, %v994
        %v996 = vpop.f32.mrf.mxu0
        %v997 = vpop.f32.mrf.mxu0
        %v998 = vadd.f32 0.0, %v997
        %v999 = vpop.f32.mrf.mxu0
        %1000 = vdwg.mxu0
        %v1001 = vpack.c.bf16 %v942, %v939
        %v1002 = vpack.c.bf16 %v950, %v947
        %v1003 = vpack.c.bf16 %v958, %v955
        %v1004 = vpack.c.bf16 %v966, %v963
        %v1005 = vpack.c.bf16 %v974, %v971
        %v1006 = vpack.c.bf16 %v982, %v979
        %v1007 = vpack.c.bf16 %v990, %v987
        %v1008 = vpack.c.bf16 %v998, %v995
        %v1009 = vld [vmem:[%s430] sm:$0xf]
        %v1010 = vld [vmem:[%s430 + $0x4] sm:$0xf]
        %v1011 = vld [vmem:[%s430 + $0x8] sm:$0xf]
        %v1012 = vld [vmem:[%s430 + $0xc] sm:$0xf]
        %v1013 = vld [vmem:[%s430 + $0x10] sm:$0xf]
        %v1014 = vld [vmem:[%s430 + $0x14] sm:$0xf]
        %v1015 = vld [vmem:[%s430 + $0x18] sm:$0xf]
        %v1016 = vld [vmem:[%s430 + $0x1c] sm:$0xf]
        %v1017 = vld [vmem:[%s430 + $0x20] sm:$0xf]
        %v1018 = vld [vmem:[%s430 + $0x24] sm:$0xf]
        %v1019 = vld [vmem:[%s430 + $0x28] sm:$0xf]
        %v1020 = vld [vmem:[%s430 + $0x2c] sm:$0xf]
        %v1021 = vld [vmem:[%s430 + $0x30] sm:$0xf]
        %v1022 = vld [vmem:[%s430 + $0x34] sm:$0xf]
        %v1023 = vld [vmem:[%s430 + $0x38] sm:$0xf]
        %v1024 = vld [vmem:[%s430 + $0x3c] sm:$0xf]
        %v1041 = vunpack.c.l.b16 %v1009
        %v1042 = vunpack.c.l.b16 %v1010
        %v1043 = vunpack.c.l.b16 %v1011
        %v1044 = vunpack.c.l.b16 %v1012
        %v1045 = vunpack.c.l.b16 %v1013
        %v1046 = vunpack.c.l.b16 %v1014
        %v1047 = vunpack.c.l.b16 %v1015
        %v1048 = vunpack.c.l.b16 %v1016
        %v1049 = vunpack.c.l.b16 %v1017
        %v1050 = vunpack.c.l.b16 %v1018
        %v1051 = vunpack.c.l.b16 %v1019
        %v1052 = vunpack.c.l.b16 %v1020
        %v1053 = vunpack.c.l.b16 %v1021
        %v1054 = vunpack.c.l.b16 %v1022
        %v1055 = vunpack.c.l.b16 %v1023
        %v1056 = vunpack.c.l.b16 %v1024
        %v1057 = vpack.c.b16 %v1042, %v1041
        %v1058 = vpack.c.b16 %v1044, %v1043
        %v1059 = vpack.c.b16 %v1046, %v1045
        %v1060 = vpack.c.b16 %v1048, %v1047
        %v1061 = vpack.c.b16 %v1050, %v1049
        %v1062 = vpack.c.b16 %v1052, %v1051
        %v1063 = vpack.c.b16 %v1054, %v1053
        %v1064 = vpack.c.b16 %v1056, %v1055
        %v1073 = vld [vmem:[#allocation9] sm:$0xf]
        %v1074 = vld [vmem:[#allocation9 + $0x4] sm:$0xf]
        %v1075 = vld [vmem:[#allocation9 + $0x8] sm:$0xf]
        %v1076 = vld [vmem:[#allocation9 + $0xc] sm:$0xf]
        %v1077 = vld [vmem:[#allocation9 + $0x10] sm:$0xf]
        %v1078 = vld [vmem:[#allocation9 + $0x14] sm:$0xf]
        %v1079 = vld [vmem:[#allocation9 + $0x18] sm:$0xf]
        %v1080 = vld [vmem:[#allocation9 + $0x1c] sm:$0xf]
        %v1081 = vld [vmem:[#allocation9 + $0x20] sm:$0xf]
        %v1082 = vld [vmem:[#allocation9 + $0x24] sm:$0xf]
        %v1083 = vld [vmem:[#allocation9 + $0x28] sm:$0xf]
        %v1084 = vld [vmem:[#allocation9 + $0x2c] sm:$0xf]
        %v1085 = vld [vmem:[#allocation9 + $0x30] sm:$0xf]
        %v1086 = vld [vmem:[#allocation9 + $0x34] sm:$0xf]
        %v1087 = vld [vmem:[#allocation9 + $0x38] sm:$0xf]
        %v1088 = vld [vmem:[#allocation9 + $0x3c] sm:$0xf]
        %v1089 = vld [vmem:[#allocation9 + $0x40] sm:$0xf]
        %v1090 = vld [vmem:[#allocation9 + $0x44] sm:$0xf]
        %v1091 = vld [vmem:[#allocation9 + $0x48] sm:$0xf]
        %v1092 = vld [vmem:[#allocation9 + $0x4c] sm:$0xf]
        %v1093 = vld [vmem:[#allocation9 + $0x50] sm:$0xf]
        %v1094 = vld [vmem:[#allocation9 + $0x54] sm:$0xf]
        %v1095 = vld [vmem:[#allocation9 + $0x58] sm:$0xf]
        %v1096 = vld [vmem:[#allocation9 + $0x5c] sm:$0xf]
        %v1097 = vld [vmem:[#allocation9 + $0x60] sm:$0xf]
        %v1098 = vld [vmem:[#allocation9 + $0x64] sm:$0xf]
        %v1099 = vld [vmem:[#allocation9 + $0x68] sm:$0xf]
        %v1100 = vld [vmem:[#allocation9 + $0x6c] sm:$0xf]
        %v1101 = vld [vmem:[#allocation9 + $0x70] sm:$0xf]
        %v1102 = vld [vmem:[#allocation9 + $0x74] sm:$0xf]
        %v1103 = vld [vmem:[#allocation9 + $0x78] sm:$0xf]
        %v1104 = vld [vmem:[#allocation9 + $0x7c] sm:$0xf]
        %v1105 = vld [vmem:[#allocation9 + $0x80] sm:$0xf]
        %v1106 = vld [vmem:[#allocation9 + $0x84] sm:$0xf]
        %v1107 = vld [vmem:[#allocation9 + $0x88] sm:$0xf]
        %v1108 = vld [vmem:[#allocation9 + $0x8c] sm:$0xf]
        %v1109 = vld [vmem:[#allocation9 + $0x90] sm:$0xf]
        %v1110 = vld [vmem:[#allocation9 + $0x94] sm:$0xf]
        %v1111 = vld [vmem:[#allocation9 + $0x98] sm:$0xf]
        %v1112 = vld [vmem:[#allocation9 + $0x9c] sm:$0xf]
        %v1113 = vld [vmem:[#allocation9 + $0xa0] sm:$0xf]
        %v1114 = vld [vmem:[#allocation9 + $0xa4] sm:$0xf]
        %v1115 = vld [vmem:[#allocation9 + $0xa8] sm:$0xf]
        %v1116 = vld [vmem:[#allocation9 + $0xac] sm:$0xf]
        %v1117 = vld [vmem:[#allocation9 + $0xb0] sm:$0xf]
        %v1118 = vld [vmem:[#allocation9 + $0xb4] sm:$0xf]
        %v1119 = vld [vmem:[#allocation9 + $0xb8] sm:$0xf]
        %v1120 = vld [vmem:[#allocation9 + $0xbc] sm:$0xf]
        %v1121 = vld [vmem:[%s5] sm:$0x1]
        %v1123 = vlaneseq
        %v1124 = vshrl.u32 %v1123, 7
        %v1125 = vsub.s32 0, %v1124
        %v1126 = vrot.slane %v1121, %v1125
        %v1176 = vunpack.c.l.b16 %v1073
        %v1177 = vunpack.c.l.b16 %v1074
        %v1178 = vunpack.c.l.b16 %v1075
        %v1179 = vunpack.c.l.b16 %v1076
        %v1180 = vunpack.c.l.b16 %v1077
        %v1181 = vunpack.c.l.b16 %v1078
        %v1182 = vunpack.c.l.b16 %v1079
        %v1183 = vunpack.c.l.b16 %v1080
        %v1184 = vunpack.c.l.b16 %v1081
        %v1185 = vunpack.c.l.b16 %v1082
        %v1186 = vunpack.c.l.b16 %v1083
        %v1187 = vunpack.c.l.b16 %v1084
        %v1188 = vunpack.c.l.b16 %v1085
        %v1189 = vunpack.c.l.b16 %v1086
        %v1190 = vunpack.c.l.b16 %v1087
        %v1191 = vunpack.c.l.b16 %v1088
        %v1192 = vunpack.c.l.b16 %v1089
        %v1193 = vunpack.c.l.b16 %v1090
        %v1194 = vunpack.c.l.b16 %v1091
        %v1195 = vunpack.c.l.b16 %v1092
        %v1196 = vunpack.c.l.b16 %v1093
        %v1197 = vunpack.c.l.b16 %v1094
        %v1198 = vunpack.c.l.b16 %v1095
        %v1199 = vunpack.c.l.b16 %v1096
        %v1200 = vunpack.c.l.b16 %v1097
        %v1201 = vunpack.c.l.b16 %v1098
        %v1202 = vunpack.c.l.b16 %v1099
        %v1203 = vunpack.c.l.b16 %v1100
        %v1204 = vunpack.c.l.b16 %v1101
        %v1205 = vunpack.c.l.b16 %v1102
        %v1206 = vunpack.c.l.b16 %v1103
        %v1207 = vunpack.c.l.b16 %v1104
        %v1208 = vunpack.c.l.b16 %v1105
        %v1209 = vunpack.c.l.b16 %v1106
        %v1210 = vunpack.c.l.b16 %v1107
        %v1211 = vunpack.c.l.b16 %v1108
        %v1212 = vunpack.c.l.b16 %v1109
        %v1213 = vunpack.c.l.b16 %v1110
        %v1214 = vunpack.c.l.b16 %v1111
        %v1215 = vunpack.c.l.b16 %v1112
        %v1216 = vunpack.c.l.b16 %v1113
        %v1217 = vunpack.c.l.b16 %v1114
        %v1218 = vunpack.c.l.b16 %v1115
        %v1219 = vunpack.c.l.b16 %v1116
        %v1220 = vunpack.c.l.b16 %v1117
        %v1221 = vunpack.c.l.b16 %v1118
        %v1222 = vunpack.c.l.b16 %v1119
        %v1223 = vunpack.c.l.b16 %v1120
        %v1224 = vpack.c.b16 %v1177, %v1176
        %v1225 = vpack.c.b16 %v1179, %v1178
        %v1226 = vpack.c.b16 %v1181, %v1180
        %v1227 = vpack.c.b16 %v1183, %v1182
        %v1228 = vpack.c.b16 %v1185, %v1184
        %v1229 = vpack.c.b16 %v1187, %v1186
        %v1230 = vpack.c.b16 %v1189, %v1188
        %v1231 = vpack.c.b16 %v1191, %v1190
        %v1232 = vpack.c.b16 %v1193, %v1192
        %v1233 = vpack.c.b16 %v1195, %v1194
        %v1234 = vpack.c.b16 %v1197, %v1196
        %v1235 = vpack.c.b16 %v1199, %v1198
        %v1236 = vpack.c.b16 %v1201, %v1200
        %v1237 = vpack.c.b16 %v1203, %v1202
        %v1238 = vpack.c.b16 %v1205, %v1204
        %v1239 = vpack.c.b16 %v1207, %v1206
        %v1240 = vpack.c.b16 %v1209, %v1208
        %v1241 = vpack.c.b16 %v1211, %v1210
        %v1242 = vpack.c.b16 %v1213, %v1212
        %v1243 = vpack.c.b16 %v1215, %v1214
        %v1244 = vpack.c.b16 %v1217, %v1216
        %v1245 = vpack.c.b16 %v1219, %v1218
        %v1246 = vpack.c.b16 %v1221, %v1220
        %v1247 = vpack.c.b16 %v1223, %v1222
        %1272 = vmatprep.subr.bf16.mxu0 0
        %1273 = vmatpush1.bf16.msra.mxu0 %v1231
        %1274 = vmatprep.subr.bf16.mxu0 0
        %1275 = vmatpush1.bf16.msra.mxu0 %v1230
        %1276 = vmatprep.subr.bf16.mxu0 0
        %1277 = vmatpush1.bf16.msra.mxu0 %v1229
        %1278 = vmatprep.subr.bf16.mxu0 0
        %1279 = vmatpush1.bf16.msra.mxu0 %v1228
        %1280 = vmatprep.subr.bf16.mxu0 0
        %1281 = vmatpush1.bf16.msra.mxu0 %v1227
        %1282 = vmatprep.subr.bf16.mxu0 0
        %1283 = vmatpush1.bf16.msra.mxu0 %v1226
        %1284 = vmatprep.subr.bf16.mxu0 0
        %1285 = vmatpush1.bf16.msra.mxu0 %v1225
        %1286 = vmatprep.subr.bf16.mxu0 0
        %1287 = vmatpush1.bf16.msra.mxu0 %v1224
        %1288 = vmatprep.subr.bf16.mxu0 0
        %1289 = vmatpush2.bf16.msra.mxu0 %v1239
        %1290 = vmatprep.subr.bf16.mxu0 0
        %1291 = vmatpush2.bf16.msra.mxu0 %v1238
        %1292 = vmatprep.subr.bf16.mxu0 0
        %1293 = vmatpush2.bf16.msra.mxu0 %v1237
        %1294 = vmatprep.subr.bf16.mxu0 0
        %1295 = vmatpush2.bf16.msra.mxu0 %v1236
        %1296 = vmatprep.subr.bf16.mxu0 0
        %1297 = vmatpush2.bf16.msra.mxu0 %v1235
        %1298 = vmatprep.subr.bf16.mxu0 0
        %1299 = vmatpush2.bf16.msra.mxu0 %v1234
        %1300 = vmatprep.subr.bf16.mxu0 0
        %1301 = vmatpush2.bf16.msra.mxu0 %v1233
        %1302 = vmatprep.subr.bf16.mxu0 0
        %1303 = vmatpush2.bf16.msra.mxu0 %v1232
        %1304 = vmatprep.mubr.bf16.mxu0 %v896
        %1305 = vmatmul.mubr.bf16.gmra.mxu0 %v1057
        %v1306 = vpop.f32.mrf.mxu0
        %v1307 = vadd.f32 %v1126, %v1306
        %v1308 = vpop.f32.mrf.mxu0
        %v1309 = vpop.f32.mrf.mxu0
        %v1310 = vadd.f32 %v1126, %v1309
        %v1311 = vpop.f32.mrf.mxu0
        %1312 = vmatprep.mubr.bf16.mxu0 %v897
        %1313 = vmatmul.mubr.bf16.gmra.mxu0 %v1058
        %v1314 = vpop.f32.mrf.mxu0
        %v1315 = vadd.f32 %v1126, %v1314
        %v1316 = vpop.f32.mrf.mxu0
        %v1317 = vpop.f32.mrf.mxu0
        %v1318 = vadd.f32 %v1126, %v1317
        %v1319 = vpop.f32.mrf.mxu0
        %1320 = vmatprep.mubr.bf16.mxu0 %v898
        %1321 = vmatmul.mubr.bf16.gmra.mxu0 %v1059
        %v1322 = vpop.f32.mrf.mxu0
        %v1323 = vadd.f32 %v1126, %v1322
        %v1324 = vpop.f32.mrf.mxu0
        %v1325 = vpop.f32.mrf.mxu0
        %v1326 = vadd.f32 %v1126, %v1325
        %v1327 = vpop.f32.mrf.mxu0
        %1328 = vmatprep.mubr.bf16.mxu0 %v899
        %1329 = vmatmul.mubr.bf16.gmra.mxu0 %v1060
        %v1330 = vpop.f32.mrf.mxu0
        %v1331 = vadd.f32 %v1126, %v1330
        %v1332 = vpop.f32.mrf.mxu0
        %v1333 = vpop.f32.mrf.mxu0
        %v1334 = vadd.f32 %v1126, %v1333
        %v1335 = vpop.f32.mrf.mxu0
        %1336 = vmatprep.mubr.bf16.mxu0 %v900
        %1337 = vmatmul.mubr.bf16.gmra.mxu0 %v1061
        %v1338 = vpop.f32.mrf.mxu0
        %v1339 = vadd.f32 %v1126, %v1338
        %v1340 = vpop.f32.mrf.mxu0
        %v1341 = vpop.f32.mrf.mxu0
        %v1342 = vadd.f32 %v1126, %v1341
        %v1343 = vpop.f32.mrf.mxu0
        %1344 = vmatprep.mubr.bf16.mxu0 %v901
        %1345 = vmatmul.mubr.bf16.gmra.mxu0 %v1062
        %v1346 = vpop.f32.mrf.mxu0
        %v1347 = vadd.f32 %v1126, %v1346
        %v1348 = vpop.f32.mrf.mxu0
        %v1349 = vpop.f32.mrf.mxu0
        %v1350 = vadd.f32 %v1126, %v1349
        %v1351 = vpop.f32.mrf.mxu0
        %1352 = vmatprep.mubr.bf16.mxu0 %v902
        %1353 = vmatmul.mubr.bf16.gmra.mxu0 %v1063
        %v1354 = vpop.f32.mrf.mxu0
        %v1355 = vadd.f32 %v1126, %v1354
        %v1356 = vpop.f32.mrf.mxu0
        %v1357 = vpop.f32.mrf.mxu0
        %v1358 = vadd.f32 %v1126, %v1357
        %v1359 = vpop.f32.mrf.mxu0
        %1360 = vmatprep.mubr.bf16.mxu0 %v903
        %1361 = vmatmul.mubr.bf16.gmra.mxu0 %v1064
        %v1362 = vpop.f32.mrf.mxu0
        %v1363 = vadd.f32 %v1126, %v1362
        %v1364 = vpop.f32.mrf.mxu0
        %v1365 = vpop.f32.mrf.mxu0
        %v1366 = vadd.f32 %v1126, %v1365
        %v1367 = vpop.f32.mrf.mxu0
        %1368 = vdwg.mxu0
        %1369 = vmatprep.subr.bf16.mxu0 0
        %1370 = vmatpush1.bf16.msra.mxu0 %v1247
        %1371 = vmatprep.subr.bf16.mxu0 0
        %1372 = vmatpush1.bf16.msra.mxu0 %v1246
        %1373 = vmatprep.subr.bf16.mxu0 0
        %1374 = vmatpush1.bf16.msra.mxu0 %v1245
        %1375 = vmatprep.subr.bf16.mxu0 0
        %1376 = vmatpush1.bf16.msra.mxu0 %v1244
        %1377 = vmatprep.subr.bf16.mxu0 0
        %1378 = vmatpush1.bf16.msra.mxu0 %v1243
        %1379 = vmatprep.subr.bf16.mxu0 0
        %1380 = vmatpush1.bf16.msra.mxu0 %v1242
        %1381 = vmatprep.subr.bf16.mxu0 0
        %1382 = vmatpush1.bf16.msra.mxu0 %v1241
        %1383 = vmatprep.subr.bf16.mxu0 0
        %1384 = vmatpush1.bf16.msra.mxu0 %v1240
        %1385 = vmatprep.subr.bf16.mxu0 0
        %1386 = vmatpush2.bf16.msra.mxu0 0
        %1387 = vmatprep.subr.bf16.mxu0 0
        %1388 = vmatpush2.bf16.msra.mxu0 0
        %1389 = vmatprep.subr.bf16.mxu0 0
        %1390 = vmatpush2.bf16.msra.mxu0 0
        %1391 = vmatprep.subr.bf16.mxu0 0
        %1392 = vmatpush2.bf16.msra.mxu0 0
        %1393 = vmatprep.subr.bf16.mxu0 0
        %1394 = vmatpush2.bf16.msra.mxu0 0
        %1395 = vmatprep.subr.bf16.mxu0 0
        %1396 = vmatpush2.bf16.msra.mxu0 0
        %1397 = vmatprep.subr.bf16.mxu0 0
        %1398 = vmatpush2.bf16.msra.mxu0 0
        %1399 = vmatprep.subr.bf16.mxu0 0
        %1400 = vmatpush2.bf16.msra.mxu0 0
        %1401 = vmatprep.mubr.bf16.mxu0 0
        %1402 = vmatmul.mubr.bf16.gmra.mxu0 %v1001
        %v1403 = vpop.f32.mrf.mxu0
        %v1404 = vadd.f32 %v1307, %v1403
        %v1405 = vpop.f32.mrf.mxu0
        %v1406 = vpop.f32.mrf.mxu0
        %v1407 = vadd.f32 %v1310, %v1406
        %v1408 = vpop.f32.mrf.mxu0
        %1409 = vmatprep.mubr.bf16.mxu0 0
        %1410 = vmatmul.mubr.bf16.gmra.mxu0 %v1002
        %v1411 = vpop.f32.mrf.mxu0
        %v1412 = vadd.f32 %v1315, %v1411
        %v1413 = vpop.f32.mrf.mxu0
        %v1414 = vpop.f32.mrf.mxu0
        %v1415 = vadd.f32 %v1318, %v1414
        %v1416 = vpop.f32.mrf.mxu0
        %1417 = vmatprep.mubr.bf16.mxu0 0
        %1418 = vmatmul.mubr.bf16.gmra.mxu0 %v1003
        %v1419 = vpop.f32.mrf.mxu0
        %v1420 = vadd.f32 %v1323, %v1419
        %v1421 = vpop.f32.mrf.mxu0
        %v1422 = vpop.f32.mrf.mxu0
        %v1423 = vadd.f32 %v1326, %v1422
        %v1424 = vpop.f32.mrf.mxu0
        %1425 = vmatprep.mubr.bf16.mxu0 0
        %1426 = vmatmul.mubr.bf16.gmra.mxu0 %v1004
        %v1427 = vpop.f32.mrf.mxu0
        %v1428 = vadd.f32 %v1331, %v1427
        %v1429 = vpop.f32.mrf.mxu0
        %v1430 = vpop.f32.mrf.mxu0
        %v1431 = vadd.f32 %v1334, %v1430
        %v1432 = vpop.f32.mrf.mxu0
        %1433 = vmatprep.mubr.bf16.mxu0 0
        %1434 = vmatmul.mubr.bf16.gmra.mxu0 %v1005
        %v1435 = vpop.f32.mrf.mxu0
        %v1436 = vadd.f32 %v1339, %v1435
        %v1437 = vpop.f32.mrf.mxu0
        %v1438 = vpop.f32.mrf.mxu0
        %v1439 = vadd.f32 %v1342, %v1438
        %v1440 = vpop.f32.mrf.mxu0
        %1441 = vmatprep.mubr.bf16.mxu0 0
        %1442 = vmatmul.mubr.bf16.gmra.mxu0 %v1006
        %v1443 = vpop.f32.mrf.mxu0
        %v1444 = vadd.f32 %v1347, %v1443
        %v1445 = vpop.f32.mrf.mxu0
        %v1446 = vpop.f32.mrf.mxu0
        %v1447 = vadd.f32 %v1350, %v1446
        %v1448 = vpop.f32.mrf.mxu0
        %1449 = vmatprep.mubr.bf16.mxu0 0
        %1450 = vmatmul.mubr.bf16.gmra.mxu0 %v1007
        %v1451 = vpop.f32.mrf.mxu0
        %v1452 = vadd.f32 %v1355, %v1451
        %v1453 = vpop.f32.mrf.mxu0
        %v1454 = vpop.f32.mrf.mxu0
        %v1455 = vadd.f32 %v1358, %v1454
        %v1456 = vpop.f32.mrf.mxu0
        %1457 = vmatprep.mubr.bf16.mxu0 0
        %1458 = vmatmul.mubr.bf16.gmra.mxu0 %v1008
        %v1459 = vpop.f32.mrf.mxu0
        %v1460 = vadd.f32 %v1363, %v1459
        %v1461 = vpop.f32.mrf.mxu0
        %v1462 = vpop.f32.mrf.mxu0
        %v1463 = vadd.f32 %v1366, %v1462
        %v1464 = vpop.f32.mrf.mxu0
        %1465 = vdwg.mxu0
        %v1466 = vmax.f32 %v1404, 0.0
        %v1467 = vmax.f32 %v1407, 0.0
        %v1468 = vmax.f32 %v1412, 0.0
        %v1469 = vmax.f32 %v1415, 0.0
        %v1470 = vmax.f32 %v1420, 0.0
        %v1471 = vmax.f32 %v1423, 0.0
        %v1472 = vmax.f32 %v1428, 0.0
        %v1473 = vmax.f32 %v1431, 0.0
        %v1474 = vmax.f32 %v1436, 0.0
        %v1475 = vmax.f32 %v1439, 0.0
        %v1476 = vmax.f32 %v1444, 0.0
        %v1477 = vmax.f32 %v1447, 0.0
        %v1478 = vmax.f32 %v1452, 0.0
        %v1479 = vmax.f32 %v1455, 0.0
        %v1480 = vmax.f32 %v1460, 0.0
        %v1481 = vmax.f32 %v1463, 0.0
        %1482 = vst [vmem:[%s484] sm:$0xff] %v1466
        %1483 = vst [vmem:[%s484 + $0x8] sm:$0xff] %v1467
        %1484 = vst [vmem:[%s484 + $0x10] sm:$0xff] %v1468
        %1485 = vst [vmem:[%s484 + $0x18] sm:$0xff] %v1469
        %1486 = vst [vmem:[%s484 + $0x20] sm:$0xff] %v1470
        %1487 = vst [vmem:[%s484 + $0x28] sm:$0xff] %v1471
        %1488 = vst [vmem:[%s484 + $0x30] sm:$0xff] %v1472
        %1489 = vst [vmem:[%s484 + $0x38] sm:$0xff] %v1473
        %1490 = vst [vmem:[%s484 + $0x40] sm:$0xff] %v1474
        %1491 = vst [vmem:[%s484 + $0x48] sm:$0xff] %v1475
        %1492 = vst [vmem:[%s484 + $0x50] sm:$0xff] %v1476
        %1493 = vst [vmem:[%s484 + $0x58] sm:$0xff] %v1477
        %1494 = vst [vmem:[%s484 + $0x60] sm:$0xff] %v1478
        %1495 = vst [vmem:[%s484 + $0x68] sm:$0xff] %v1479
        %1496 = vst [vmem:[%s484 + $0x70] sm:$0xff] %v1480
        %1497 = vst [vmem:[%s484 + $0x78] sm:$0xff] %v1481
        %v1498 = vld [vmem:[#allocation2] sm:$0xff]
        %v1499 = vld [vmem:[#allocation2 + $0x8] sm:$0xff]
        %v1500 = vld [vmem:[#allocation2 + $0x10] sm:$0xff]
        %v1501 = vld [vmem:[#allocation2 + $0x18] sm:$0xff]
        %v1502 = vld [vmem:[#allocation2 + $0x20] sm:$0xff]
        %v1503 = vld [vmem:[#allocation2 + $0x28] sm:$0xff]
        %v1504 = vld [vmem:[#allocation2 + $0x30] sm:$0xff]
        %v1505 = vld [vmem:[#allocation2 + $0x38] sm:$0xff]
        %v1506 = vld [vmem:[#allocation2 + $0x40] sm:$0xff]
        %v1507 = vld [vmem:[#allocation2 + $0x48] sm:$0xff]
        %v1508 = vld [vmem:[#allocation2 + $0x50] sm:$0xff]
        %v1509 = vld [vmem:[#allocation2 + $0x58] sm:$0xff]
        %v1510 = vld [vmem:[#allocation2 + $0x60] sm:$0xff]
        %v1511 = vld [vmem:[#allocation2 + $0x68] sm:$0xff]
        %v1512 = vld [vmem:[#allocation2 + $0x70] sm:$0xff]
        %v1513 = vld [vmem:[#allocation2 + $0x78] sm:$0xff]
        %v1514 = vpack.c.bf16 %v1467, %v1466
        %v1515 = vpack.c.bf16 %v1469, %v1468
        %v1516 = vpack.c.bf16 %v1471, %v1470
        %v1517 = vpack.c.bf16 %v1473, %v1472
        %v1518 = vpack.c.bf16 %v1475, %v1474
        %v1519 = vpack.c.bf16 %v1477, %v1476
        %v1520 = vpack.c.bf16 %v1479, %v1478
        %v1521 = vpack.c.bf16 %v1481, %v1480
        %1522 = vxpose.xlu0.c.b16.start [1/8] %v639, 128
        %1523 = vxpose.xlu0.c.b16.cont [2/8] %v640, 128
        %1524 = vxpose.xlu0.c.b16.cont [3/8] %v641, 128
        %1525 = vxpose.xlu0.c.b16.cont [4/8] %v642, 128
        %1526 = vxpose.xlu0.c.b16.cont [5/8] %v643, 128
        %1527 = vxpose.xlu0.c.b16.cont [6/8] %v644, 128
        %1528 = vxpose.xlu0.c.b16.cont [7/8] %v645, 128
        %1529 = vxpose.xlu0.c.b16.end [8/8] %v646, 128
        %v1530 = vpop.trf.xlu0
        %v1531 = vpop.trf.xlu0
        %v1532 = vpop.trf.xlu0
        %v1533 = vpop.trf.xlu0
        %v1534 = vpop.trf.xlu0
        %v1535 = vpop.trf.xlu0
        %v1536 = vpop.trf.xlu0
        %v1537 = vpop.trf.xlu0
        %1538 = vmatprep.subr.bf16.mxu0 0
        %1539 = vmatpush1.bf16.msra.mxu0 %v1521
        %1540 = vmatprep.subr.bf16.mxu0 0
        %1541 = vmatpush1.bf16.msra.mxu0 %v1520
        %1542 = vmatprep.subr.bf16.mxu0 0
        %1543 = vmatpush1.bf16.msra.mxu0 %v1519
        %1544 = vmatprep.subr.bf16.mxu0 0
        %1545 = vmatpush1.bf16.msra.mxu0 %v1518
        %1546 = vmatprep.subr.bf16.mxu0 0
        %1547 = vmatpush1.bf16.msra.mxu0 %v1517
        %1548 = vmatprep.subr.bf16.mxu0 0
        %1549 = vmatpush1.bf16.msra.mxu0 %v1516
        %1550 = vmatprep.subr.bf16.mxu0 0
        %1551 = vmatpush1.bf16.msra.mxu0 %v1515
        %1552 = vmatprep.subr.bf16.mxu0 0
        %1553 = vmatpush1.bf16.msra.mxu0 %v1514
        %1554 = vmatprep.subr.bf16.mxu0 0
        %1555 = vmatpush2.bf16.msra.mxu0 0
        %1556 = vmatprep.subr.bf16.mxu0 0
        %1557 = vmatpush2.bf16.msra.mxu0 0
        %1558 = vmatprep.subr.bf16.mxu0 0
        %1559 = vmatpush2.bf16.msra.mxu0 0
        %1560 = vmatprep.subr.bf16.mxu0 0
        %1561 = vmatpush2.bf16.msra.mxu0 0
        %1562 = vmatprep.subr.bf16.mxu0 0
        %1563 = vmatpush2.bf16.msra.mxu0 0
        %1564 = vmatprep.subr.bf16.mxu0 0
        %1565 = vmatpush2.bf16.msra.mxu0 0
        %1566 = vmatprep.subr.bf16.mxu0 0
        %1567 = vmatpush2.bf16.msra.mxu0 0
        %1568 = vmatprep.subr.bf16.mxu0 0
        %1569 = vmatpush2.bf16.msra.mxu0 0
        %1570 = vmatprep.mubr.bf16.mxu0 0
        %1571 = vmatmul.mubr.bf16.gmra.mxu0 %v1530
        %v1572 = vpop.f32.mrf.mxu0
        %v1573 = vadd.f32 0.0, %v1572
        %v1574 = vpop.f32.mrf.mxu0
        %v1575 = vpop.f32.mrf.mxu0
        %v1576 = vadd.f32 0.0, %v1575
        %v1577 = vpop.f32.mrf.mxu0
        %1578 = vmatprep.mubr.bf16.mxu0 0
        %1579 = vmatmul.mubr.bf16.gmra.mxu0 %v1531
        %v1580 = vpop.f32.mrf.mxu0
        %v1581 = vadd.f32 0.0, %v1580
        %v1582 = vpop.f32.mrf.mxu0
        %v1583 = vpop.f32.mrf.mxu0
        %v1584 = vadd.f32 0.0, %v1583
        %v1585 = vpop.f32.mrf.mxu0
        %1586 = vmatprep.mubr.bf16.mxu0 0
        %1587 = vmatmul.mubr.bf16.gmra.mxu0 %v1532
        %v1588 = vpop.f32.mrf.mxu0
        %v1589 = vadd.f32 0.0, %v1588
        %v1590 = vpop.f32.mrf.mxu0
        %v1591 = vpop.f32.mrf.mxu0
        %v1592 = vadd.f32 0.0, %v1591
        %v1593 = vpop.f32.mrf.mxu0
        %1594 = vmatprep.mubr.bf16.mxu0 0
        %1595 = vmatmul.mubr.bf16.gmra.mxu0 %v1533
        %v1596 = vpop.f32.mrf.mxu0
        %v1597 = vadd.f32 0.0, %v1596
        %v1598 = vpop.f32.mrf.mxu0
        %v1599 = vpop.f32.mrf.mxu0
        %v1600 = vadd.f32 0.0, %v1599
        %v1601 = vpop.f32.mrf.mxu0
        %1602 = vmatprep.mubr.bf16.mxu0 0
        %1603 = vmatmul.mubr.bf16.gmra.mxu0 %v1534
        %v1604 = vpop.f32.mrf.mxu0
        %v1605 = vadd.f32 0.0, %v1604
        %v1606 = vpop.f32.mrf.mxu0
        %v1607 = vpop.f32.mrf.mxu0
        %v1608 = vadd.f32 0.0, %v1607
        %v1609 = vpop.f32.mrf.mxu0
        %1610 = vmatprep.mubr.bf16.mxu0 0
        %1611 = vmatmul.mubr.bf16.gmra.mxu0 %v1535
        %v1612 = vpop.f32.mrf.mxu0
        %v1613 = vadd.f32 0.0, %v1612
        %v1614 = vpop.f32.mrf.mxu0
        %v1615 = vpop.f32.mrf.mxu0
        %v1616 = vadd.f32 0.0, %v1615
        %v1617 = vpop.f32.mrf.mxu0
        %1618 = vmatprep.mubr.bf16.mxu0 0
        %1619 = vmatmul.mubr.bf16.gmra.mxu0 %v1536
        %v1620 = vpop.f32.mrf.mxu0
        %v1621 = vadd.f32 0.0, %v1620
        %v1622 = vpop.f32.mrf.mxu0
        %v1623 = vpop.f32.mrf.mxu0
        %v1624 = vadd.f32 0.0, %v1623
        %v1625 = vpop.f32.mrf.mxu0
        %1626 = vmatprep.mubr.bf16.mxu0 0
        %1627 = vmatmul.mubr.bf16.gmra.mxu0 %v1537
        %v1628 = vpop.f32.mrf.mxu0
        %v1629 = vadd.f32 0.0, %v1628
        %v1630 = vpop.f32.mrf.mxu0
        %v1631 = vpop.f32.mrf.mxu0
        %v1632 = vadd.f32 0.0, %v1631
        %v1633 = vpop.f32.mrf.mxu0
        %1634 = vdwg.mxu0
        %v1635 = vadd.f32 %v1498, %v1573
        %v1636 = vadd.f32 %v1499, %v1576
        %v1637 = vadd.f32 %v1500, %v1581
        %v1638 = vadd.f32 %v1501, %v1584
        %v1639 = vadd.f32 %v1502, %v1589
        %v1640 = vadd.f32 %v1503, %v1592
        %v1641 = vadd.f32 %v1504, %v1597
        %v1642 = vadd.f32 %v1505, %v1600
        %v1643 = vadd.f32 %v1506, %v1605
        %v1644 = vadd.f32 %v1507, %v1608
        %v1645 = vadd.f32 %v1508, %v1613
        %v1646 = vadd.f32 %v1509, %v1616
        %v1647 = vadd.f32 %v1510, %v1621
        %v1648 = vadd.f32 %v1511, %v1624
        %v1649 = vadd.f32 %v1512, %v1629
        %v1650 = vadd.f32 %v1513, %v1632
        %1651 = vst [vmem:[#allocation2] sm:$0xff] %v1635
        %1652 = vst [vmem:[#allocation2 + $0x8] sm:$0xff] %v1636
        %1653 = vst [vmem:[#allocation2 + $0x10] sm:$0xff] %v1637
        %1654 = vst [vmem:[#allocation2 + $0x18] sm:$0xff] %v1638
        %1655 = vst [vmem:[#allocation2 + $0x20] sm:$0xff] %v1639
        %1656 = vst [vmem:[#allocation2 + $0x28] sm:$0xff] %v1640
        %1657 = vst [vmem:[#allocation2 + $0x30] sm:$0xff] %v1641
        %1658 = vst [vmem:[#allocation2 + $0x38] sm:$0xff] %v1642
        %1659 = vst [vmem:[#allocation2 + $0x40] sm:$0xff] %v1643
        %1660 = vst [vmem:[#allocation2 + $0x48] sm:$0xff] %v1644
        %1661 = vst [vmem:[#allocation2 + $0x50] sm:$0xff] %v1645
        %1662 = vst [vmem:[#allocation2 + $0x58] sm:$0xff] %v1646
        %1663 = vst [vmem:[#allocation2 + $0x60] sm:$0xff] %v1647
        %1664 = vst [vmem:[#allocation2 + $0x68] sm:$0xff] %v1648
        %1665 = vst [vmem:[#allocation2 + $0x70] sm:$0xff] %v1649
        %1666 = vst [vmem:[#allocation2 + $0x78] sm:$0xff] %v1650
        %v1667 = vld [vmem:[#allocation3] sm:$0x1]
        %v1668 = vadd.f32 %v1466, %v1467
        %v1669 = vadd.f32 %v1668, %v1468
        %v1670 = vadd.f32 %v1669, %v1469
        %v1671 = vadd.f32 %v1670, %v1470
        %v1672 = vadd.f32 %v1671, %v1471
        %v1673 = vadd.f32 %v1672, %v1472
        %v1674 = vadd.f32 %v1673, %v1473
        %v1675 = vadd.f32 %v1674, %v1474
        %v1676 = vadd.f32 %v1675, %v1475
        %v1677 = vadd.f32 %v1676, %v1476
        %v1678 = vadd.f32 %v1677, %v1477
        %v1679 = vadd.f32 %v1678, %v1478
        %v1680 = vadd.f32 %v1679, %v1479
        %v1681 = vadd.f32 %v1680, %v1480
        %v1682 = vadd.f32 %v1681, %v1481
        %v1683 = vrot.slane %v1682, 4
        %v1684 = vadd.f32 %v1682, %v1683
        %v1685 = vrot.slane %v1684, 2
        %v1686 = vadd.f32 %v1684, %v1685
        %v1687 = vrot.slane %v1686, 1
        %v1688 = vadd.f32 %v1686, %v1687
        %v1689 = vadd.f32 %v1667, %v1688
        %1690 = vst [vmem:[#allocation3] sm:$0x1] %v1689
        %p1691 = scmp.eq.s32.totalorder %s32, 1
        // Predicated region
        $region77: #{tpu_custom_call.1} parent=59 // pred_check
          %p1692 = pneg %p1691
        $region78: #{tpu_custom_call.1} parent=59 // pred_check_branch
          %1694 = sbr.rel (%p1692) target = $region80
        $region79: #{tpu_custom_call.1} parent=59 // pred_region
          %v1695 = vld [vmem:[#allocation2] sm:$0xff]
          %v1696 = vld [vmem:[#allocation2 + $0x8] sm:$0xff]
          %v1697 = vld [vmem:[#allocation2 + $0x10] sm:$0xff]
          %v1698 = vld [vmem:[#allocation2 + $0x18] sm:$0xff]
          %v1699 = vld [vmem:[#allocation2 + $0x20] sm:$0xff]
          %v1700 = vld [vmem:[#allocation2 + $0x28] sm:$0xff]
          %v1701 = vld [vmem:[#allocation2 + $0x30] sm:$0xff]
          %v1702 = vld [vmem:[#allocation2 + $0x38] sm:$0xff]
          %v1703 = vld [vmem:[#allocation2 + $0x40] sm:$0xff]
          %v1704 = vld [vmem:[#allocation2 + $0x48] sm:$0xff]
          %v1705 = vld [vmem:[#allocation2 + $0x50] sm:$0xff]
          %v1706 = vld [vmem:[#allocation2 + $0x58] sm:$0xff]
          %v1707 = vld [vmem:[#allocation2 + $0x60] sm:$0xff]
          %v1708 = vld [vmem:[#allocation2 + $0x68] sm:$0xff]
          %v1709 = vld [vmem:[#allocation2 + $0x70] sm:$0xff]
          %v1710 = vld [vmem:[#allocation2 + $0x78] sm:$0xff]
          %v1711 = vunpack.c.l.bf16 %v525
          %v1712 = vunpack.c.l.bf16 %v526
          %v1713 = vunpack.c.l.bf16 %v527
          %v1714 = vunpack.c.l.bf16 %v528
          %v1715 = vunpack.c.l.bf16 %v529
          %v1716 = vunpack.c.l.bf16 %v530
          %v1717 = vunpack.c.l.bf16 %v531
          %v1718 = vunpack.c.l.bf16 %v532
          %v1719 = vunpack.c.l.bf16 %v533
          %v1720 = vunpack.c.l.bf16 %v534
          %v1721 = vunpack.c.l.bf16 %v535
          %v1722 = vunpack.c.l.bf16 %v536
          %v1723 = vunpack.c.l.bf16 %v537
          %v1724 = vunpack.c.l.bf16 %v538
          %v1725 = vunpack.c.l.bf16 %v539
          %v1726 = vunpack.c.l.bf16 %v540
          %v1727 = vld [vmem:[%s6] sm:$0xff]
          %v1728 = vld [vmem:[%s6 + $0x8] sm:$0xff]
          %v1729 = vld [vmem:[%s6 + $0x10] sm:$0xff]
          %v1730 = vld [vmem:[%s6 + $0x18] sm:$0xff]
          %v1731 = vld [vmem:[%s6 + $0x20] sm:$0xff]
          %v1732 = vld [vmem:[%s6 + $0x28] sm:$0xff]
          %v1733 = vld [vmem:[%s6 + $0x30] sm:$0xff]
          %v1734 = vld [vmem:[%s6 + $0x38] sm:$0xff]
          %v1735 = vld [vmem:[%s6 + $0x40] sm:$0xff]
          %v1736 = vld [vmem:[%s6 + $0x48] sm:$0xff]
          %v1737 = vld [vmem:[%s6 + $0x50] sm:$0xff]
          %v1738 = vld [vmem:[%s6 + $0x58] sm:$0xff]
          %v1739 = vld [vmem:[%s6 + $0x60] sm:$0xff]
          %v1740 = vld [vmem:[%s6 + $0x68] sm:$0xff]
          %v1741 = vld [vmem:[%s6 + $0x70] sm:$0xff]
          %v1742 = vld [vmem:[%s6 + $0x78] sm:$0xff]
          %v1743 = vld [vmem:[%s6 + $0x80] sm:$0xff]
          %v1744 = vld [vmem:[%s6 + $0x88] sm:$0xff]
          %v1745 = vld [vmem:[%s6 + $0x90] sm:$0xff]
          %v1746 = vld [vmem:[%s6 + $0x98] sm:$0xff]
          %v1747 = vld [vmem:[%s6 + $0xa0] sm:$0xff]
          %v1748 = vld [vmem:[%s6 + $0xa8] sm:$0xff]
          %v1749 = vld [vmem:[%s6 + $0xb0] sm:$0xff]
          %v1750 = vld [vmem:[%s6 + $0xb8] sm:$0xff]
          %v1751 = vld [vmem:[%s6 + $0xc0] sm:$0xff]
          %v1752 = vld [vmem:[%s6 + $0xc8] sm:$0xff]
          %v1753 = vld [vmem:[%s6 + $0xd0] sm:$0xff]
          %v1754 = vld [vmem:[%s6 + $0xd8] sm:$0xff]
          %v1755 = vld [vmem:[%s6 + $0xe0] sm:$0xff]
          %v1756 = vld [vmem:[%s6 + $0xe8] sm:$0xff]
          %v1757 = vld [vmem:[%s6 + $0xf0] sm:$0xff]
          %v1758 = vld [vmem:[%s6 + $0xf8] sm:$0xff]
          %v1759 = vld [vmem:[%s7] sm:$0x1]
          %v1761 = vlaneseq
          %v1762 = vshrl.u32 %v1761, 7
          %v1763 = vsub.s32 0, %v1762
          %v1764 = vrot.slane %v1759, %v1763
          %1766 = vmatprep.subr.mxu0 0.0
          %1767 = vmatpush1.msra.mxu0 %v1742
          %1768 = vmatprep.subr.mxu0 0.0
          %1769 = vmatpush1.msra.mxu0 %v1741
          %1770 = vmatprep.subr.mxu0 0.0
          %1771 = vmatpush1.msra.mxu0 %v1740
          %1772 = vmatprep.subr.mxu0 0.0
          %1773 = vmatpush1.msra.mxu0 %v1739
          %1774 = vmatprep.subr.mxu0 0.0
          %1775 = vmatpush1.msra.mxu0 %v1738
          %1776 = vmatprep.subr.mxu0 0.0
          %1777 = vmatpush1.msra.mxu0 %v1737
          %1778 = vmatprep.subr.mxu0 0.0
          %1779 = vmatpush1.msra.mxu0 %v1736
          %1780 = vmatprep.subr.mxu0 0.0
          %1781 = vmatpush1.msra.mxu0 %v1735
          %1782 = vmatprep.subr.mxu0 0.0
          %1783 = vmatpush1.msra.mxu0 %v1734
          %1784 = vmatprep.subr.mxu0 0.0
          %1785 = vmatpush1.msra.mxu0 %v1733
          %1786 = vmatprep.subr.mxu0 0.0
          %1787 = vmatpush1.msra.mxu0 %v1732
          %1788 = vmatprep.subr.mxu0 0.0
          %1789 = vmatpush1.msra.mxu0 %v1731
          %1790 = vmatprep.subr.mxu0 0.0
          %1791 = vmatpush1.msra.mxu0 %v1730
          %1792 = vmatprep.subr.mxu0 0.0
          %1793 = vmatpush1.msra.mxu0 %v1729
          %1794 = vmatprep.subr.mxu0 0.0
          %1795 = vmatpush1.msra.mxu0 %v1728
          %1796 = vmatprep.subr.mxu0 0.0
          %1797 = vmatpush1.msra.mxu0 %v1727
          %1798 = vmatprep.subr.mxu0 0.0
          %1799 = vmatpush2.msra.mxu0 %v1758
          %1800 = vmatprep.subr.mxu0 0.0
          %1801 = vmatpush2.msra.mxu0 %v1757
          %1802 = vmatprep.subr.mxu0 0.0
          %1803 = vmatpush2.msra.mxu0 %v1756
          %1804 = vmatprep.subr.mxu0 0.0
          %1805 = vmatpush2.msra.mxu0 %v1755
          %1806 = vmatprep.subr.mxu0 0.0
          %1807 = vmatpush2.msra.mxu0 %v1754
          %1808 = vmatprep.subr.mxu0 0.0
          %1809 = vmatpush2.msra.mxu0 %v1753
          %1810 = vmatprep.subr.mxu0 0.0
          %1811 = vmatpush2.msra.mxu0 %v1752
          %1812 = vmatprep.subr.mxu0 0.0
          %1813 = vmatpush2.msra.mxu0 %v1751
          %1814 = vmatprep.subr.mxu0 0.0
          %1815 = vmatpush2.msra.mxu0 %v1750
          %1816 = vmatprep.subr.mxu0 0.0
          %1817 = vmatpush2.msra.mxu0 %v1749
          %1818 = vmatprep.subr.mxu0 0.0
          %1819 = vmatpush2.msra.mxu0 %v1748
          %1820 = vmatprep.subr.mxu0 0.0
          %1821 = vmatpush2.msra.mxu0 %v1747
          %1822 = vmatprep.subr.mxu0 0.0
          %1823 = vmatpush2.msra.mxu0 %v1746
          %1824 = vmatprep.subr.mxu0 0.0
          %1825 = vmatpush2.msra.mxu0 %v1745
          %1826 = vmatprep.subr.mxu0 0.0
          %1827 = vmatpush2.msra.mxu0 %v1744
          %1828 = vmatprep.subr.mxu0 0.0
          %1829 = vmatpush2.msra.mxu0 %v1743
          %1830 = vmatprep.mubr.f32.mxu0 %v1711
          %1831 = vmatmul.mubr.f32.gmra.mxu0 %v1695
          %v1832 = vpop.f32.mrf.mxu0
          %v1833 = vadd.f32 %v1764, %v1832
          %v1834 = vpop.f32.mrf.mxu0
          %1835 = vmatprep.mubr.f32.mxu0 %v1712
          %1836 = vmatmul.mubr.f32.gmra.mxu0 %v1696
          %v1837 = vpop.f32.mrf.mxu0
          %v1838 = vadd.f32 %v1764, %v1837
          %v1839 = vpop.f32.mrf.mxu0
          %1840 = vmatprep.mubr.f32.mxu0 %v1713
          %1841 = vmatmul.mubr.f32.gmra.mxu0 %v1697
          %v1842 = vpop.f32.mrf.mxu0
          %v1843 = vadd.f32 %v1764, %v1842
          %v1844 = vpop.f32.mrf.mxu0
          %1845 = vmatprep.mubr.f32.mxu0 %v1714
          %1846 = vmatmul.mubr.f32.gmra.mxu0 %v1698
          %v1847 = vpop.f32.mrf.mxu0
          %v1848 = vadd.f32 %v1764, %v1847
          %v1849 = vpop.f32.mrf.mxu0
          %1850 = vmatprep.mubr.f32.mxu0 %v1715
          %1851 = vmatmul.mubr.f32.gmra.mxu0 %v1699
          %v1852 = vpop.f32.mrf.mxu0
          %v1853 = vadd.f32 %v1764, %v1852
          %v1854 = vpop.f32.mrf.mxu0
          %1855 = vmatprep.mubr.f32.mxu0 %v1716
          %1856 = vmatmul.mubr.f32.gmra.mxu0 %v1700
          %v1857 = vpop.f32.mrf.mxu0
          %v1858 = vadd.f32 %v1764, %v1857
          %v1859 = vpop.f32.mrf.mxu0
          %1860 = vmatprep.mubr.f32.mxu0 %v1717
          %1861 = vmatmul.mubr.f32.gmra.mxu0 %v1701
          %v1862 = vpop.f32.mrf.mxu0
          %v1863 = vadd.f32 %v1764, %v1862
          %v1864 = vpop.f32.mrf.mxu0
          %1865 = vmatprep.mubr.f32.mxu0 %v1718
          %1866 = vmatmul.mubr.f32.gmra.mxu0 %v1702
          %v1867 = vpop.f32.mrf.mxu0
          %v1868 = vadd.f32 %v1764, %v1867
          %v1869 = vpop.f32.mrf.mxu0
          %1870 = vmatprep.mubr.f32.mxu0 %v1719
          %1871 = vmatmul.mubr.f32.gmra.mxu0 %v1703
          %v1872 = vpop.f32.mrf.mxu0
          %v1873 = vadd.f32 %v1764, %v1872
          %v1874 = vpop.f32.mrf.mxu0
          %1875 = vmatprep.mubr.f32.mxu0 %v1720
          %1876 = vmatmul.mubr.f32.gmra.mxu0 %v1704
          %v1877 = vpop.f32.mrf.mxu0
          %v1878 = vadd.f32 %v1764, %v1877
          %v1879 = vpop.f32.mrf.mxu0
          %1880 = vmatprep.mubr.f32.mxu0 %v1721
          %1881 = vmatmul.mubr.f32.gmra.mxu0 %v1705
          %v1882 = vpop.f32.mrf.mxu0
          %v1883 = vadd.f32 %v1764, %v1882
          %v1884 = vpop.f32.mrf.mxu0
          %1885 = vmatprep.mubr.f32.mxu0 %v1722
          %1886 = vmatmul.mubr.f32.gmra.mxu0 %v1706
          %v1887 = vpop.f32.mrf.mxu0
          %v1888 = vadd.f32 %v1764, %v1887
          %v1889 = vpop.f32.mrf.mxu0
          %1890 = vmatprep.mubr.f32.mxu0 %v1723
          %1891 = vmatmul.mubr.f32.gmra.mxu0 %v1707
          %v1892 = vpop.f32.mrf.mxu0
          %v1893 = vadd.f32 %v1764, %v1892
          %v1894 = vpop.f32.mrf.mxu0
          %1895 = vmatprep.mubr.f32.mxu0 %v1724
          %1896 = vmatmul.mubr.f32.gmra.mxu0 %v1708
          %v1897 = vpop.f32.mrf.mxu0
          %v1898 = vadd.f32 %v1764, %v1897
          %v1899 = vpop.f32.mrf.mxu0
          %1900 = vmatprep.mubr.f32.mxu0 %v1725
          %1901 = vmatmul.mubr.f32.gmra.mxu0 %v1709
          %v1902 = vpop.f32.mrf.mxu0
          %v1903 = vadd.f32 %v1764, %v1902
          %v1904 = vpop.f32.mrf.mxu0
          %1905 = vmatprep.mubr.f32.mxu0 %v1726
          %1906 = vmatmul.mubr.f32.gmra.mxu0 %v1710
          %v1907 = vpop.f32.mrf.mxu0
          %v1908 = vadd.f32 %v1764, %v1907
          %v1909 = vpop.f32.mrf.mxu0
          %1910 = vdwg.mxu0
          %v1911 = vmax.f32 %v1833, 0.0
          %v1912 = vmax.f32 %v1838, 0.0
          %v1913 = vmax.f32 %v1843, 0.0
          %v1914 = vmax.f32 %v1848, 0.0
          %v1915 = vmax.f32 %v1853, 0.0
          %v1916 = vmax.f32 %v1858, 0.0
          %v1917 = vmax.f32 %v1863, 0.0
          %v1918 = vmax.f32 %v1868, 0.0
          %v1919 = vmax.f32 %v1873, 0.0
          %v1920 = vmax.f32 %v1878, 0.0
          %v1921 = vmax.f32 %v1883, 0.0
          %v1922 = vmax.f32 %v1888, 0.0
          %v1923 = vmax.f32 %v1893, 0.0
          %v1924 = vmax.f32 %v1898, 0.0
          %v1925 = vmax.f32 %v1903, 0.0
          %v1926 = vmax.f32 %v1908, 0.0
          %1927 = vst [vmem:[#allocation11] sm:$0xff] %v1911
          %1928 = vst [vmem:[#allocation11 + $0x8] sm:$0xff] %v1912
          %1929 = vst [vmem:[#allocation11 + $0x10] sm:$0xff] %v1913
          %1930 = vst [vmem:[#allocation11 + $0x18] sm:$0xff] %v1914
          %1931 = vst [vmem:[#allocation11 + $0x20] sm:$0xff] %v1915
          %1932 = vst [vmem:[#allocation11 + $0x28] sm:$0xff] %v1916
          %1933 = vst [vmem:[#allocation11 + $0x30] sm:$0xff] %v1917
          %1934 = vst [vmem:[#allocation11 + $0x38] sm:$0xff] %v1918
          %1935 = vst [vmem:[#allocation11 + $0x40] sm:$0xff] %v1919
          %1936 = vst [vmem:[#allocation11 + $0x48] sm:$0xff] %v1920
          %1937 = vst [vmem:[#allocation11 + $0x50] sm:$0xff] %v1921
          %1938 = vst [vmem:[#allocation11 + $0x58] sm:$0xff] %v1922
          %1939 = vst [vmem:[#allocation11 + $0x60] sm:$0xff] %v1923
          %1940 = vst [vmem:[#allocation11 + $0x68] sm:$0xff] %v1924
          %1941 = vst [vmem:[#allocation11 + $0x70] sm:$0xff] %v1925
          %1942 = vst [vmem:[#allocation11 + $0x78] sm:$0xff] %v1926
          %v1943 = vld [vmem:[#allocation3] sm:$0x1]
          %v1944 = vadd.f32 %v1911, %v1912
          %v1945 = vadd.f32 %v1944, %v1913
          %v1946 = vadd.f32 %v1945, %v1914
          %v1947 = vadd.f32 %v1946, %v1915
          %v1948 = vadd.f32 %v1947, %v1916
          %v1949 = vadd.f32 %v1948, %v1917
          %v1950 = vadd.f32 %v1949, %v1918
          %v1951 = vadd.f32 %v1950, %v1919
          %v1952 = vadd.f32 %v1951, %v1920
          %v1953 = vadd.f32 %v1952, %v1921
          %v1954 = vadd.f32 %v1953, %v1922
          %v1955 = vadd.f32 %v1954, %v1923
          %v1956 = vadd.f32 %v1955, %v1924
          %v1957 = vadd.f32 %v1956, %v1925
          %v1958 = vadd.f32 %v1957, %v1926
          %v1959 = vrot.slane %v1958, 4
          %v1960 = vadd.f32 %v1958, %v1959
          %v1961 = vrot.slane %v1960, 2
          %v1962 = vadd.f32 %v1960, %v1961
          %v1963 = vrot.slane %v1962, 1
          %v1964 = vadd.f32 %v1962, %v1963
          %v1965 = vld [vmem:[%s8] sm:$0xff]
          %v1966 = vld [vmem:[%s8 + $0x8] sm:$0xff]
          %v1967 = vld [vmem:[%s8 + $0x10] sm:$0xff]
          %v1968 = vld [vmem:[%s8 + $0x18] sm:$0xff]
          %v1969 = vld [vmem:[%s8 + $0x20] sm:$0xff]
          %v1970 = vld [vmem:[%s8 + $0x28] sm:$0xff]
          %v1971 = vld [vmem:[%s8 + $0x30] sm:$0xff]
          %v1972 = vld [vmem:[%s8 + $0x38] sm:$0xff]
          %v1973 = vld [vmem:[%s8 + $0x40] sm:$0xff]
          %v1974 = vld [vmem:[%s8 + $0x48] sm:$0xff]
          %v1975 = vld [vmem:[%s8 + $0x50] sm:$0xff]
          %v1976 = vld [vmem:[%s8 + $0x58] sm:$0xff]
          %v1977 = vld [vmem:[%s8 + $0x60] sm:$0xff]
          %v1978 = vld [vmem:[%s8 + $0x68] sm:$0xff]
          %v1979 = vld [vmem:[%s8 + $0x70] sm:$0xff]
          %v1980 = vld [vmem:[%s8 + $0x78] sm:$0xff]
          %v1981 = vld [vmem:[%s8 + $0x80] sm:$0xff]
          %v1982 = vld [vmem:[%s8 + $0x88] sm:$0xff]
          %v1983 = vld [vmem:[%s8 + $0x90] sm:$0xff]
          %v1984 = vld [vmem:[%s8 + $0x98] sm:$0xff]
          %v1985 = vld [vmem:[%s8 + $0xa0] sm:$0xff]
          %v1986 = vld [vmem:[%s8 + $0xa8] sm:$0xff]
          %v1987 = vld [vmem:[%s8 + $0xb0] sm:$0xff]
          %v1988 = vld [vmem:[%s8 + $0xb8] sm:$0xff]
          %v1989 = vld [vmem:[%s8 + $0xc0] sm:$0xff]
          %v1990 = vld [vmem:[%s8 + $0xc8] sm:$0xff]
          %v1991 = vld [vmem:[%s8 + $0xd0] sm:$0xff]
          %v1992 = vld [vmem:[%s8 + $0xd8] sm:$0xff]
          %v1993 = vld [vmem:[%s8 + $0xe0] sm:$0xff]
          %v1994 = vld [vmem:[%s8 + $0xe8] sm:$0xff]
          %v1995 = vld [vmem:[%s8 + $0xf0] sm:$0xff]
          %v1996 = vld [vmem:[%s8 + $0xf8] sm:$0xff]
          %v1997 = vld [vmem:[%s9] sm:$0x1]
          %1998 = vmatprep.subr.mxu0 0.0
          %1999 = vmatpush1.msra.mxu0 %v1980
          %2000 = vmatprep.subr.mxu0 0.0
          %2001 = vmatpush1.msra.mxu0 %v1979
          %2002 = vmatprep.subr.mxu0 0.0
          %2003 = vmatpush1.msra.mxu0 %v1978
          %2004 = vmatprep.subr.mxu0 0.0
          %2005 = vmatpush1.msra.mxu0 %v1977
          %2006 = vmatprep.subr.mxu0 0.0
          %2007 = vmatpush1.msra.mxu0 %v1976
          %2008 = vmatprep.subr.mxu0 0.0
          %2009 = vmatpush1.msra.mxu0 %v1975
          %2010 = vmatprep.subr.mxu0 0.0
          %2011 = vmatpush1.msra.mxu0 %v1974
          %2012 = vmatprep.subr.mxu0 0.0
          %2013 = vmatpush1.msra.mxu0 %v1973
          %2014 = vmatprep.subr.mxu0 0.0
          %2015 = vmatpush1.msra.mxu0 %v1972
          %2016 = vmatprep.subr.mxu0 0.0
          %2017 = vmatpush1.msra.mxu0 %v1971
          %2018 = vmatprep.subr.mxu0 0.0
          %2019 = vmatpush1.msra.mxu0 %v1970
          %2020 = vmatprep.subr.mxu0 0.0
          %2021 = vmatpush1.msra.mxu0 %v1969
          %2022 = vmatprep.subr.mxu0 0.0
          %2023 = vmatpush1.msra.mxu0 %v1968
          %2024 = vmatprep.subr.mxu0 0.0
          %2025 = vmatpush1.msra.mxu0 %v1967
          %2026 = vmatprep.subr.mxu0 0.0
          %2027 = vmatpush1.msra.mxu0 %v1966
          %2028 = vmatprep.subr.mxu0 0.0
          %2029 = vmatpush1.msra.mxu0 %v1965
          %2030 = vmatprep.subr.mxu0 0.0
          %2031 = vmatpush2.msra.mxu0 %v1996
          %2032 = vmatprep.subr.mxu0 0.0
          %2033 = vmatpush2.msra.mxu0 %v1995
          %2034 = vmatprep.subr.mxu0 0.0
          %2035 = vmatpush2.msra.mxu0 %v1994
          %2036 = vmatprep.subr.mxu0 0.0
          %2037 = vmatpush2.msra.mxu0 %v1993
          %2038 = vmatprep.subr.mxu0 0.0
          %2039 = vmatpush2.msra.mxu0 %v1992
          %2040 = vmatprep.subr.mxu0 0.0
          %2041 = vmatpush2.msra.mxu0 %v1991
          %2042 = vmatprep.subr.mxu0 0.0
          %2043 = vmatpush2.msra.mxu0 %v1990
          %2044 = vmatprep.subr.mxu0 0.0
          %2045 = vmatpush2.msra.mxu0 %v1989
          %2046 = vmatprep.subr.mxu0 0.0
          %2047 = vmatpush2.msra.mxu0 %v1988
          %2048 = vmatprep.subr.mxu0 0.0
          %2049 = vmatpush2.msra.mxu0 %v1987
          %2050 = vmatprep.subr.mxu0 0.0
          %2051 = vmatpush2.msra.mxu0 %v1986
          %2052 = vmatprep.subr.mxu0 0.0
          %2053 = vmatpush2.msra.mxu0 %v1985
          %2054 = vmatprep.subr.mxu0 0.0
          %2055 = vmatpush2.msra.mxu0 %v1984
          %2056 = vmatprep.subr.mxu0 0.0
          %2057 = vmatpush2.msra.mxu0 %v1983
          %2058 = vmatprep.subr.mxu0 0.0
          %2059 = vmatpush2.msra.mxu0 %v1982
          %2060 = vmatprep.subr.mxu0 0.0
          %2061 = vmatpush2.msra.mxu0 %v1981
          %2062 = vmatprep.mubr.f32.mxu0 %v1964
          %2063 = vmatmul.mubr.f32.gmra.mxu0 %v1943
          %v2064 = vpop.f32.mrf.mxu0
          %v2065 = vadd.f32 %v1997, %v2064
          %v2066 = vpop.f32.mrf.mxu0
          %2067 = vdwg.mxu0
          %v2068 = vmax.f32 %v2065, 0.0
          %2069 = vst [vmem:[#allocation13] sm:$0x1] %v2068
        $region80: #{tpu_custom_call.1} parent=59 // pred_fallthru
          _
        %s2070 = sand.u32 %s265, 1
        %s2071 = scalar_lea.sflag [#allocation6], %s2070
        %s2072 = sand.u32 %s265, 1
        %s2073 = smul.addr %s2072, 128
        %s2074 = scalar_lea.vmem [#allocation10], %s2073
        // Predicated region
        $region81: #{tpu_custom_call.1} parent=59 // pred_check
          %p2075 = pneg %p275
        $region82: #{tpu_custom_call.1} parent=59 // pred_check_branch
          %2077 = sbr.rel (%p2075) target = $region84
        $region83: #{tpu_custom_call.1} parent=59 // pred_region
          %s2078 = smul.u32 16, %s32
          %s2080 = ssub.s32 2048, 2048
          %2081 = vsyncadd %s2071, %s2080
          %s2082 = smul.addr %s2078, 128
          %s2083 = scalar_lea.hbm %s10, %s2082
          %s2084 = sshll.u32 %s2074, 4
          %s2085 = int_to_ptr.vmem [resolvable:$true] %s2084
          %2090 = dma.vmem_to_hbm [thread:$0]  %s2085, 2048, %s2083, %s2071, 128, 128, 8
        $region84: #{tpu_custom_call.1} parent=59 // pred_fallthru
          _
        // Predicated region
        $region85: #{tpu_custom_call.1} parent=59 // pred_check
          %p2091 = pneg %p296
        $region86: #{tpu_custom_call.1} parent=59 // pred_check_branch
          %2093 = sbr.rel (%p2091) target = $region88
        $region87: #{tpu_custom_call.1} parent=59 // pred_region
          %s2095 = ssub.s32 2048, 2048
          %2096 = vsyncadd [#allocation12], %s2095
          %s2097 = sshll.u32 [#allocation11], 4
          %s2098 = int_to_ptr.vmem [resolvable:$true] %s2097
          %2103 = dma.vmem_to_hbm [thread:$0]  %s2098, 2048, %s11, [#allocation12], 128, 128, 8
        $region88: #{tpu_custom_call.1} parent=59 // pred_fallthru
          _
        // Predicated region
        $region89: #{tpu_custom_call.1} parent=59 // pred_check
          %p2104 = pneg %p317
        $region90: #{tpu_custom_call.1} parent=59 // pred_check_branch
          %2106 = sbr.rel (%p2104) target = $region92
        $region91: #{tpu_custom_call.1} parent=59 // pred_region
          %s2108 = ssub.s32 16, 16
          %2109 = vsyncadd [#allocation12], %s2108
          %s2111 = sshll.u32 [#allocation13], 4
          %s2112 = int_to_ptr.vmem [resolvable:$true] %s2111
          %2114 = dma.vmem_to_hbm [thread:$0]  %s2112, 16, %s12, [#allocation12]
        $region92: #{tpu_custom_call.1} parent=59 // pred_fallthru
          _
        // Predicated region
        $region93: #{tpu_custom_call.1} parent=59 // pred_check
          %p2115 = pneg %p296
        $region94: #{tpu_custom_call.1} parent=59 // pred_check_branch
          %2117 = sbr.rel (%p2115) target = $region96
        $region95: #{tpu_custom_call.1} parent=59 // pred_region
          %2118 = dma.done [#allocation12], 2048
        $region96: #{tpu_custom_call.1} parent=59 // pred_fallthru
          _
        // Predicated region
        $region97: #{tpu_custom_call.1} parent=59 // pred_check
          %p2119 = pneg %p317
        $region98: #{tpu_custom_call.1} parent=59 // pred_check_branch
          %2121 = sbr.rel (%p2119) target = $region100
        $region99: #{tpu_custom_call.1} parent=59 // pred_region
          %2122 = dma.done [#allocation12], 16
        $region100: #{tpu_custom_call.1} parent=59 // pred_fallthru
          _
      $region60: #{tpu_custom_call.1} parent=5 // pred_fallthru
        _
      %p2123 = scmp.le.s32.totalorder 2, %s27
      // Predicated region
      $region101: #{tpu_custom_call.1} parent=5 // pred_check
        %p2124 = pneg %p2123
      $region102: #{tpu_custom_call.1} parent=5 // pred_check_branch
        %2126 = sbr.rel (%p2124) target = $region104
      $region103: #{tpu_custom_call.1} parent=5 // pred_region
        %s2127 = ssub.s32 %s27, 2
        // Predicated region
        $region105: #{tpu_custom_call.1} parent=103 // pred_check
          %p2128 = pneg %p281
        $region106: #{tpu_custom_call.1} parent=103 // pred_check_branch
          %2130 = sbr.rel (%p2128) target = $region108
        $region107: #{tpu_custom_call.1} parent=103 // pred_region
          %s2131 = sand.u32 %s266, 1
          %s2132 = scalar_lea.sflag [#allocation6], %s2131
          %s2133 = sand.u32 %s266, 1
          %s2134 = smul.addr %s2133, 128
          %s2135 = scalar_lea.vmem [#allocation10], %s2134
          %2136 = dma.done %s2132, 2048
        $region108: #{tpu_custom_call.1} parent=103 // pred_fallthru
          _
      $region104: #{tpu_custom_call.1} parent=5 // pred_fallthru
        _
    $region6: #{tpu_custom_call.1} parent=1 // loop_footer
      %s31 = sadd.s32 1, %s27
    $region7: #{tpu_custom_call.1} parent=1 // loop_footer_branch
      %26 = sbr.rel target = $region3
    $region8: #{tpu_custom_call.1} parent=1 // loop_exit
      _
    %2137 = vsyncpa [#allocation5], 1
    %s2138 = scalar_lea.sflag [#allocation5], 1
    %2139 = vsyncpa %s2138, 1
    %2140 = vsyncpa [#allocation8], 1
    %2141 = vsyncpa [#allocation6], 1
    %s2142 = scalar_lea.sflag [#allocation6], 1
    %2143 = vsyncpa %s2142, 1
    %2144 = vsyncpa [#allocation12], 1

</llo_original>
